<compile_context>
chip_gen: v7x
topology: tpu7x:2x2x1
jax: 0.10.0
libtpu: 0.0.40
codegen_flags: <defaults>
</compile_context>

<pallas_src>
import math
import functools

import jax
import jax.numpy as jnp
from jax.experimental import pallas as pl
from jax.experimental.pallas import tpu as pltpu

# ----------------------------- config (small, synthetic) ----------------------
VOCAB_SIZE = 32     # stands in for the hardcoded 151669 (Qwen vocab) in the torch code
NUM_USERS  = 8
NUM_ITEMS  = 128    # lane-dense item axis (multiple of 128)
EMB_DIM    = 32
T_PROMPT   = 8
T_MAIN     = 8
BATCH      = 2
TOTAL_TOKENS = VOCAB_SIZE + NUM_USERS + NUM_ITEMS
HIDDEN_MLP = 4 * EMB_DIM   # 128 → lane-dense MLP


# ----------------------------- fused Pallas kernel -----------------------------
def _fused_forward_kernel(x_ref, bias_ref, lbl_ref, emb_ref, content_ref,
                          wq_ref, wk_ref, wv_ref, wo_ref, w1_ref,
                          w2wit_ref, wit_ref,
                          logits_ref, stats_ref, *, Tp, Tm):
    """One grid step == one batch element (fully independent)."""
    f32 = jnp.float32
    bf16 = jnp.bfloat16
    D = x_ref.shape[1]
    T = Tp + Tm
    scale = 1.0 / math.sqrt(D)

    # ---- activations: single f32 load, single bf16 cast ----------------------
    x = x_ref[...]                       # [T, D] f32 (prompt rows then main rows)
    xb = x.astype(bf16)
    x_main = x[Tp:, :]                   # [Tm, D] f32 residual input
    xb_main = xb[Tp:, :]                 # [Tm, D] bf16 (sublane-aligned slice)

    # ---- Q/K/V: three lane-aligned dots (no merged-QKV sub-slicing) ----------
    q = jnp.dot(xb_main, wq_ref[...], preferred_element_type=f32)   # [Tm, D]
    k = jnp.dot(xb,      wk_ref[...], preferred_element_type=f32)   # [T,  D]
    v = jnp.dot(xb,      wv_ref[...], preferred_element_type=f32)   # [T,  D]

    # ---- attention: scores + precomputed additive causal/padding bias --------
    s = jax.lax.dot_general(q.astype(bf16), k.astype(bf16),
                            (((1,), (1,)), ((), ())),
                            preferred_element_type=f32) * scale     # [Tm, T]
    s = s + bias_ref[...]                                           # [Tm, T]

    m_ = jnp.max(s, axis=-1, keepdims=True)
    p = jnp.exp(s - m_)
    l = jnp.sum(p, axis=-1, keepdims=True)
    p = p / l                               # exact divide (parity with reference)
    attn = jnp.dot(p.astype(bf16), v.astype(bf16),
                   preferred_element_type=f32)                      # [Tm, D]

    # ---- output projection + residual + GELU MLP (W2 folded into item head) --
    h = x_main + jnp.dot(attn.astype(bf16), wo_ref[...],
                         preferred_element_type=f32)                # [Tm, D] f32
    hb = h.astype(bf16)
    hh = jax.nn.gelu(jnp.dot(hb, w1_ref[...], preferred_element_type=f32),
                     approximate=True)                              # [Tm, H] f32

    # logits = (h + hh@W2) @ item_emb^T  ==  h@wit + hh@(W2@wit)
    logits = (jnp.dot(hb, wit_ref[...], preferred_element_type=f32)
              + jnp.dot(hh.astype(bf16), w2wit_ref[...],
                        preferred_element_type=f32))                # [Tm, N] f32
    logits_ref[...] = logits

    # ---- shifted, masked cross-entropy partial sum (labels: int32, -1=inactive)
    N = logits.shape[1]
    m_l = jnp.max(logits, axis=-1, keepdims=True)
    lse = jnp.log(jnp.sum(jnp.exp(logits - m_l), axis=-1, keepdims=True)) + m_l
    lbl = lbl_ref[...]                                              # [Tm, 1] int32
    col = jax.lax.broadcasted_iota(jnp.int32, (Tm, N), 1)
    picked = jnp.sum(jnp.where(col == lbl, logits, 0.0),
                     axis=-1, keepdims=True)                        # [Tm, 1]
    active = (lbl >= 0).astype(f32)
    ce_sum = jnp.sum((lse - picked) * active)                       # scalar

    # ---- MSE(reduction='sum') regularizer partial sum -------------------------
    d = emb_ref[...] - content_ref[...]
    mse_sum = jnp.sum(d * d)                                        # scalar

    # lane-dense per-batch stats slab: [0,0]=ce_sum, [0,1]=mse_sum
    row = jax.lax.broadcasted_iota(jnp.int32, (8, 128), 0)
    lane = jax.lax.broadcasted_iota(jnp.int32, (8, 128), 1)
    stats_ref[...] = jnp.where((row == 0) & (lane == 0), ce_sum,
                               jnp.where((row == 0) & (lane == 1), mse_sum, 0.0))


def _fused_forward(x_all, bias, labels, emb_flat, content_flat,
                   wq, wk, wv, wo, w1, w2wit, wit, *, B, Tp, Tm):
    T = Tp + Tm
    D = x_all.shape[1]
    N = wit.shape[1]
    H = w1.shape[1]
    kernel = functools.partial(_fused_forward_kernel, Tp=Tp, Tm=Tm)
    return pl.pallas_call(
        kernel,
        out_shape=(jax.ShapeDtypeStruct((B * Tm, N), jnp.float32),
                   jax.ShapeDtypeStruct((B * 8, 128), jnp.float32)),
        grid=(B,),
        in_specs=[
            pl.BlockSpec((T, D),   lambda b: (b, 0)),    # x (batch-contiguous rows)
            pl.BlockSpec((Tm, T),  lambda b: (b, 0)),    # additive attention bias
            pl.BlockSpec((Tm, 1),  lambda b: (b, 0)),    # shifted labels (int32)
            pl.BlockSpec((T, D),   lambda b: (b, 0)),    # raw token embeds
            pl.BlockSpec((T, D),   lambda b: (b, 0)),    # content embeds
            pl.BlockSpec((D, D),   lambda b: (0, 0)),    # Wq  (bf16)
            pl.BlockSpec((D, D),   lambda b: (0, 0)),    # Wk  (bf16)
            pl.BlockSpec((D, D),   lambda b: (0, 0)),    # Wv  (bf16)
            pl.BlockSpec((D, D),   lambda b: (0, 0)),    # Wo  (bf16)
            pl.BlockSpec((D, H),   lambda b: (0, 0)),    # W1  (bf16)
            pl.BlockSpec((H, N),   lambda b: (0, 0)),    # W2 @ item_emb^T (bf16)
            pl.BlockSpec((D, N),   lambda b: (0, 0)),    # tied item_emb^T (bf16)
        ],
        out_specs=(pl.BlockSpec((Tm, N),  lambda b: (b, 0)),
                   pl.BlockSpec((8, 128), lambda b: (b, 0))),
        compiler_params=pltpu.CompilerParams(dimension_semantics=("parallel",)),
    )(x_all, bias, labels, emb_flat, content_flat, wq, wk, wv, wo, w1, w2wit, wit)


# ----------------------------- synthetic base-model params --------------------
def init_params(key):
    ks = jax.random.split(key, 8)
    s = 0.02
    return {
        "wte": s * jax.random.normal(ks[0], (TOTAL_TOKENS, EMB_DIM), jnp.float32),
        "wpe": s * jax.random.normal(ks[1], (T_PROMPT + T_MAIN, EMB_DIM), jnp.float32),
        "wq":  s * jax.random.normal(ks[2], (EMB_DIM, EMB_DIM), jnp.float32),
        "wk":  s * jax.random.normal(ks[3], (EMB_DIM, EMB_DIM), jnp.float32),
        "wv":  s * jax.random.normal(ks[4], (EMB_DIM, EMB_DIM), jnp.float32),
        "wo":  s * jax.random.normal(ks[5], (EMB_DIM, EMB_DIM), jnp.float32),
        "w1":  s * jax.random.normal(ks[6], (EMB_DIM, HIDDEN_MLP), jnp.float32),
        "w2":  s * jax.random.normal(ks[7], (HIDDEN_MLP, EMB_DIM), jnp.float32),
    }


# ----------------------------- collaborative GPT forward ----------------------
def collaborative_gpt_forward(params, input_ids_prompt, input_ids_main,
                              labels_main=None, attention_mask=None,
                              regularize=False, lambda_V=None, content_embeds=None):
    B, Tp = input_ids_prompt.shape
    Tm = input_ids_main.shape[1]
    T = Tp + Tm
    D = EMB_DIM
    bf16 = jnp.bfloat16

    wte, wpe = params["wte"], params["wpe"]
    emb_p = jnp.take(wte, input_ids_prompt, axis=0)                  # [B, Tp, D]
    emb_m = jnp.take(wte, input_ids_main, axis=0)                    # [B, Tm, D]
    x_p = emb_p + wpe[:Tp][None]
    x_m = emb_m + wpe[Tp:T][None]
    # batch-contiguous layout: rows of batch b are x_all[b*T:(b+1)*T]
    x_all = jnp.concatenate([x_p, x_m], axis=1).reshape(B * T, D)    # [B*T, D]

    if attention_mask is None:
        attention_mask = jnp.ones((B, T), dtype=jnp.int32)
    am = attention_mask.astype(jnp.int32)

    # additive attention bias (causal + key padding), precomputed in the wrapper
    qi = jnp.arange(Tm)[:, None] + Tp                                # [Tm, 1]
    ki = jnp.arange(T)[None, :]                                      # [1, T]
    keep = (ki <= qi)[None] & (am[:, None, :] > 0)                   # [B, Tm, T]
    bias = jnp.where(keep, 0.0, -1e9).astype(jnp.float32).reshape(B * Tm, T)

    # shifted labels as compact int32 (-1 => inactive / padded row)
    if labels_main is not None:
        # original: shift_labels - 151669 - num_users (151669 == tokenizer vocab size)
        shift_labels = labels_main[:, 1:] - VOCAB_SIZE - NUM_USERS   # [B, Tm-1]
        # TODO(synk): the torch data-dependent warning print is host-side only; the clamp matches torch.
        shift_labels = jnp.clip(shift_labels, 0, NUM_ITEMS - 1)
        active = (am[:, Tp + 1:] == 1)                               # [B, Tm-1]
        cnt = jnp.sum(active.astype(jnp.float32))
        lbl = jnp.where(active, shift_labels, -1)                    # [B, Tm-1]
        lbl = jnp.pad(lbl, ((0, 0), (0, 1)), constant_values=-1)     # [B, Tm]
        labels2d = lbl.reshape(B * Tm, 1).astype(jnp.int32)
    else:
        labels2d = jnp.full((B * Tm, 1), -1, jnp.int32)
        cnt = jnp.float32(0.0)

    # MSE regularizer operands (raw token embeds, no positions — matches base_model.embed)
    emb_flat = jnp.concatenate([emb_p, emb_m], axis=1).reshape(B * T, D)
    if content_embeds is not None:
        content_flat = content_embeds.reshape(B * T, D).astype(jnp.float32)
    else:
        content_flat = jnp.zeros_like(emb_flat)

    # bf16 weights for the native MXU datapath (f32 accumulation in-kernel)
    item_emb = wte[VOCAB_SIZE + NUM_USERS:]                          # tied item embeddings [N, D]
    wit = item_emb.T                                                 # [D, N]
    w2wit = params["w2"] @ wit                                       # [H, N]  (W2 folded into item head)
    wq, wk, wv = params["wq"].astype(bf16), params["wk"].astype(bf16), params["wv"].astype(bf16)
    wo, w1 = params["wo"].astype(bf16), params["w1"].astype(bf16)
    wit_b, w2wit_b = wit.astype(bf16), w2wit.astype(bf16)

    logits2d, stats = _fused_forward(x_all, bias, labels2d, emb_flat, content_flat,
                                     wq, wk, wv, wo, w1, w2wit_b, wit_b,
                                     B=B, Tp=Tp, Tm=Tm)
    item_logits = logits2d.reshape(B, Tm, NUM_ITEMS)

    stats3 = stats.reshape(B, 8, 128)
    ce_sum = jnp.sum(stats3[:, 0, 0])
    mse_sum = jnp.sum(stats3[:, 0, 1])

    outputs = (item_logits,)
    if labels_main is not None:
        # CrossEntropyLoss(reduction='mean') over active positions.
        # NOTE: torch would produce NaN on an all-masked batch; we guard 0/0 instead.
        loss = ce_sum / jnp.maximum(cnt, 1.0)
        if regularize:
            regularize_loss = lambda_V * mse_sum
            loss = loss + regularize_loss
            outputs = (loss, regularize_loss) + outputs
        else:
            outputs = (loss,) + outputs
    return outputs


# ----------------------------- driver ------------------------------------------
if __name__ == "__main__":
    key = jax.random.PRNGKey(0)
    kp, k1, k2, k3 = jax.random.split(key, 4)
    params = init_params(kp)

    input_ids_prompt = jax.random.randint(k1, (BATCH, T_PROMPT), 0,
                                          VOCAB_SIZE + NUM_USERS, dtype=jnp.int32)
    input_ids_main = jax.random.randint(k2, (BATCH, T_MAIN),
                                        VOCAB_SIZE + NUM_USERS,
                                        VOCAB_SIZE + NUM_USERS + NUM_ITEMS,
                                        dtype=jnp.int32)
    labels_main = input_ids_main
    attention_mask = jnp.ones((BATCH, T_PROMPT + T_MAIN), dtype=jnp.int32).at[0, -1].set(0)
    content_embeds = 0.02 * jax.random.normal(k3, (BATCH, T_PROMPT + T_MAIN, EMB_DIM),
                                              jnp.float32)

    @jax.jit
    def run(params, ids_p, ids_m, labels, mask, content):
        return collaborative_gpt_forward(params, ids_p, ids_m,
                                         labels_main=labels, attention_mask=mask,
                                         regularize=True, lambda_V=0.01,
                                         content_embeds=content)

    loss, reg_loss, item_logits = run(params, input_ids_prompt, input_ids_main,
                                      labels_main, attention_mask, content_embeds)
    jax.block_until_ready((loss, reg_loss, item_logits))

    assert item_logits.shape == (BATCH, T_MAIN, NUM_ITEMS)
    assert loss.shape == () and reg_loss.shape == ()
    assert jnp.isfinite(loss) and jnp.isfinite(reg_loss)
    print("KERNEL_OK")
</pallas_src>

<mosaic_0001>
module attributes {stable_mosaic.version = 11 : i64} {
  func.func @_fused_forward_kernel(%arg0: i32, %arg1: memref<16x32xf32, #tpu.memory_space<vmem>>, %arg2: memref<8x16xf32, #tpu.memory_space<vmem>>, %arg3: memref<8x1xi32, #tpu.memory_space<vmem>>, %arg4: memref<16x32xf32, #tpu.memory_space<vmem>>, %arg5: memref<16x32xf32, #tpu.memory_space<vmem>>, %arg6: memref<32x32xbf16, #tpu.memory_space<vmem>>, %arg7: memref<32x32xbf16, #tpu.memory_space<vmem>>, %arg8: memref<32x32xbf16, #tpu.memory_space<vmem>>, %arg9: memref<32x32xbf16, #tpu.memory_space<vmem>>, %arg10: memref<32x128xbf16, #tpu.memory_space<vmem>>, %arg11: memref<128x128xbf16, #tpu.memory_space<vmem>>, %arg12: memref<32x128xbf16, #tpu.memory_space<vmem>>, %arg13: memref<8x128xf32, #tpu.memory_space<vmem>>, %arg14: memref<8x128xf32, #tpu.memory_space<vmem>>) attributes {dimension_semantics = [#tpu.dimension_semantics<parallel>], iteration_bounds = array<i64: 2>, scalar_prefetch = 0 : i64, scratch_operands = 0 : i64, tpu.core_type = #tpu.core_type<tc>, window_params = [{transform_indices = @transform_0, window_bounds = array<i64: 16, 32>}, {transform_indices = @transform_1, window_bounds = array<i64: 8, 16>}, {transform_indices = @transform_2, window_bounds = array<i64: 8, 1>}, {transform_indices = @transform_3, window_bounds = array<i64: 16, 32>}, {transform_indices = @transform_4, window_bounds = array<i64: 16, 32>}, {pipeline_mode = #tpu.pipeline_mode<synchronous>, transform_indices = @transform_5, window_bounds = array<i64: 32, 32>}, {pipeline_mode = #tpu.pipeline_mode<synchronous>, transform_indices = @transform_6, window_bounds = array<i64: 32, 32>}, {pipeline_mode = #tpu.pipeline_mode<synchronous>, transform_indices = @transform_7, window_bounds = array<i64: 32, 32>}, {pipeline_mode = #tpu.pipeline_mode<synchronous>, transform_indices = @transform_8, window_bounds = array<i64: 32, 32>}, {pipeline_mode = #tpu.pipeline_mode<synchronous>, transform_indices = @transform_9, window_bounds = array<i64: 32, 128>}, {pipeline_mode = #tpu.pipeline_mode<synchronous>, transform_indices = @transform_10, window_bounds = array<i64: 128, 128>}, {pipeline_mode = #tpu.pipeline_mode<synchronous>, transform_indices = @transform_11, window_bounds = array<i64: 32, 128>}, {transform_indices = @transform_12, window_bounds = array<i64: 8, 128>}, {transform_indices = @transform_13, window_bounds = array<i64: 8, 128>}]} {
    %c0 = arith.constant 0 : index
    %c0_0 = arith.constant 0 : index
    %0 = vector.load %arg1[%c0, %c0_0] : memref<16x32xf32, #tpu.memory_space<vmem>>, vector<16x32xf32>
    %1 = arith.truncf %0 : vector<16x32xf32> to vector<16x32xbf16>
    %2 = vector.extract_strided_slice %0 {offsets = [8, 0], sizes = [8, 32], strides = [1, 1]} : vector<16x32xf32> to vector<8x32xf32>
    %3 = vector.extract_strided_slice %1 {offsets = [8, 0], sizes = [8, 32], strides = [1, 1]} : vector<16x32xbf16> to vector<8x32xbf16>
    %c0_1 = arith.constant 0 : index
    %c0_2 = arith.constant 0 : index
    %4 = vector.load %arg6[%c0_1, %c0_2] : memref<32x32xbf16, #tpu.memory_space<vmem>>, vector<32x32xbf16>
    %cst = arith.constant dense<0.000000e+00> : vector<8x32xf32>
    %5 = tpu.matmul %3, %4, %cst {dimension_numbers = #tpu.dot_dimension_numbers<[1], [0], [0], [1], [0, 0, 1, 1], [], []>} : vector<8x32xbf16>, vector<32x32xbf16>, vector<8x32xf32> -> vector<8x32xf32>
    %c0_3 = arith.constant 0 : index
    %c0_4 = arith.constant 0 : index
    %6 = vector.load %arg7[%c0_3, %c0_4] : memref<32x32xbf16, #tpu.memory_space<vmem>>, vector<32x32xbf16>
    %cst_5 = arith.constant dense<0.000000e+00> : vector<16x32xf32>
    %7 = tpu.matmul %1, %6, %cst_5 {dimension_numbers = #tpu.dot_dimension_numbers<[1], [0], [0], [1], [0, 0, 1, 1], [], []>} : vector<16x32xbf16>, vector<32x32xbf16>, vector<16x32xf32> -> vector<16x32xf32>
    %c0_6 = arith.constant 0 : index
    %c0_7 = arith.constant 0 : index
    %8 = vector.load %arg8[%c0_6, %c0_7] : memref<32x32xbf16, #tpu.memory_space<vmem>>, vector<32x32xbf16>
    %cst_8 = arith.constant dense<0.000000e+00> : vector<16x32xf32>
    %9 = tpu.matmul %1, %8, %cst_8 {dimension_numbers = #tpu.dot_dimension_numbers<[1], [0], [0], [1], [0, 0, 1, 1], [], []>} : vector<16x32xbf16>, vector<32x32xbf16>, vector<16x32xf32> -> vector<16x32xf32>
    %10 = arith.truncf %5 : vector<8x32xf32> to vector<8x32xbf16>
    %11 = arith.truncf %7 : vector<16x32xf32> to vector<16x32xbf16>
    %cst_9 = arith.constant dense<0.000000e+00> : vector<8x16xf32>
    %12 = tpu.matmul %10, %11, %cst_9 {dimension_numbers = #tpu.dot_dimension_numbers<[1], [1], [0], [0], [0, 0, 1, 0], [], []>} : vector<8x32xbf16>, vector<16x32xbf16>, vector<8x16xf32> -> vector<8x16xf32>
    %cst_10 = arith.constant 0.176776692 : f32
    %13 = vector.broadcast %cst_10 : f32 to vector<8x16xf32>
    %14 = arith.mulf %12, %13 : vector<8x16xf32>
    %c0_11 = arith.constant 0 : index
    %c0_12 = arith.constant 0 : index
    %15 = vector.load %arg2[%c0_11, %c0_12] : memref<8x16xf32, #tpu.memory_space<vmem>>, vector<8x16xf32>
    %16 = arith.addf %14, %15 : vector<8x16xf32>
    %cst_13 = arith.constant dense<0xFF800000> : vector<8xf32>
    %17 = vector.multi_reduction <maximumf>, %16, %cst_13 [1] : vector<8x16xf32> to vector<8xf32>
    %18 = vector.shape_cast %17 : vector<8xf32> to vector<8x1xf32>
    %19 = vector.broadcast %18 : vector<8x1xf32> to vector<8x16xf32>
    %20 = arith.subf %16, %19 : vector<8x16xf32>
    %21 = math.exp %20 : vector<8x16xf32>
    %cst_14 = arith.constant dense<0.000000e+00> : vector<8xf32>
    %22 = vector.multi_reduction <add>, %21, %cst_14 [1] : vector<8x16xf32> to vector<8xf32>
    %23 = vector.shape_cast %22 : vector<8xf32> to vector<8x1xf32>
    %24 = vector.broadcast %23 : vector<8x1xf32> to vector<8x16xf32>
    %25 = arith.divf %21, %24 : vector<8x16xf32>
    %26 = arith.truncf %25 : vector<8x16xf32> to vector<8x16xbf16>
    %27 = arith.truncf %9 : vector<16x32xf32> to vector<16x32xbf16>
    %cst_15 = arith.constant dense<0.000000e+00> : vector<8x32xf32>
    %28 = tpu.matmul %26, %27, %cst_15 {dimension_numbers = #tpu.dot_dimension_numbers<[1], [0], [0], [1], [0, 0, 1, 1], [], []>} : vector<8x16xbf16>, vector<16x32xbf16>, vector<8x32xf32> -> vector<8x32xf32>
    %29 = arith.truncf %28 : vector<8x32xf32> to vector<8x32xbf16>
    %c0_16 = arith.constant 0 : index
    %c0_17 = arith.constant 0 : index
    %30 = vector.load %arg9[%c0_16, %c0_17] : memref<32x32xbf16, #tpu.memory_space<vmem>>, vector<32x32xbf16>
    %cst_18 = arith.constant dense<0.000000e+00> : vector<8x32xf32>
    %31 = tpu.matmul %29, %30, %cst_18 {dimension_numbers = #tpu.dot_dimension_numbers<[1], [0], [0], [1], [0, 0, 1, 1], [], []>} : vector<8x32xbf16>, vector<32x32xbf16>, vector<8x32xf32> -> vector<8x32xf32>
    %32 = arith.addf %2, %31 : vector<8x32xf32>
    %33 = arith.truncf %32 : vector<8x32xf32> to vector<8x32xbf16>
    %c0_19 = arith.constant 0 : index
    %c0_20 = arith.constant 0 : index
    %34 = vector.load %arg10[%c0_19, %c0_20] : memref<32x128xbf16, #tpu.memory_space<vmem>>, vector<32x128xbf16>
    %cst_21 = arith.constant dense<0.000000e+00> : vector<8x128xf32>
    %35 = tpu.matmul %33, %34, %cst_21 {dimension_numbers = #tpu.dot_dimension_numbers<[1], [0], [0], [1], [0, 0, 1, 1], [], []>} : vector<8x32xbf16>, vector<32x128xbf16>, vector<8x128xf32> -> vector<8x128xf32>
    %36 = arith.mulf %35, %35 : vector<8x128xf32>
    %37 = arith.mulf %35, %36 : vector<8x128xf32>
    %cst_22 = arith.constant 4.471500e-02 : f32
    %38 = vector.broadcast %cst_22 : f32 to vector<8x128xf32>
    %39 = arith.mulf %38, %37 : vector<8x128xf32>
    %40 = arith.addf %35, %39 : vector<8x128xf32>
    %cst_23 = arith.constant 0.797884583 : f32
    %41 = vector.broadcast %cst_23 : f32 to vector<8x128xf32>
    %42 = arith.mulf %41, %40 : vector<8x128xf32>
    %43 = math.tanh %42 : vector<8x128xf32>
    %cst_24 = arith.constant 1.000000e+00 : f32
    %44 = vector.broadcast %cst_24 : f32 to vector<8x128xf32>
    %45 = arith.addf %44, %43 : vector<8x128xf32>
    %cst_25 = arith.constant 5.000000e-01 : f32
    %46 = vector.broadcast %cst_25 : f32 to vector<8x128xf32>
    %47 = arith.mulf %46, %45 : vector<8x128xf32>
    %48 = arith.mulf %35, %47 : vector<8x128xf32>
    %c0_26 = arith.constant 0 : index
    %c0_27 = arith.constant 0 : index
    %49 = vector.load %arg12[%c0_26, %c0_27] : memref<32x128xbf16, #tpu.memory_space<vmem>>, vector<32x128xbf16>
    %cst_28 = arith.constant dense<0.000000e+00> : vector<8x128xf32>
    %50 = tpu.matmul %33, %49, %cst_28 {dimension_numbers = #tpu.dot_dimension_numbers<[1], [0], [0], [1], [0, 0, 1, 1], [], []>} : vector<8x32xbf16>, vector<32x128xbf16>, vector<8x128xf32> -> vector<8x128xf32>
    %51 = arith.truncf %48 : vector<8x128xf32> to vector<8x128xbf16>
    %c0_29 = arith.constant 0 : index
    %c0_30 = arith.constant 0 : index
    %52 = vector.load %arg11[%c0_29, %c0_30] : memref<128x128xbf16, #tpu.memory_space<vmem>>, vector<128x128xbf16>
    %cst_31 = arith.constant dense<0.000000e+00> : vector<8x128xf32>
    %53 = tpu.matmul %51, %52, %cst_31 {dimension_numbers = #tpu.dot_dimension_numbers<[1], [0], [0], [1], [0, 0, 1, 1], [], []>} : vector<8x128xbf16>, vector<128x128xbf16>, vector<8x128xf32> -> vector<8x128xf32>
    %54 = arith.addf %50, %53 : vector<8x128xf32>
    %c0_32 = arith.constant 0 : index
    %c0_33 = arith.constant 0 : index
    %55 = vector.load %arg13[%c0_32, %c0_33] : memref<8x128xf32, #tpu.memory_space<vmem>>, vector<8x128xf32>
    tpu.vector_store %arg13[%c0_32, %c0_33], %54 {strides = array<i32>} : memref<8x128xf32, #tpu.memory_space<vmem>>, vector<8x128xf32>,
    %cst_34 = arith.constant dense<0xFF800000> : vector<8xf32>
    %56 = vector.multi_reduction <maximumf>, %54, %cst_34 [1] : vector<8x128xf32> to vector<8xf32>
    %57 = vector.shape_cast %56 : vector<8xf32> to vector<8x1xf32>
    %58 = vector.broadcast %57 : vector<8x1xf32> to vector<8x128xf32>
    %59 = arith.subf %54, %58 : vector<8x128xf32>
    %60 = math.exp %59 : vector<8x128xf32>
    %cst_35 = arith.constant dense<0.000000e+00> : vector<8xf32>
    %61 = vector.multi_reduction <add>, %60, %cst_35 [1] : vector<8x128xf32> to vector<8xf32>
    %62 = vector.shape_cast %61 : vector<8xf32> to vector<8x1xf32>
    %63 = math.log %62 : vector<8x1xf32>
    %64 = arith.addf %63, %57 : vector<8x1xf32>
    %c0_36 = arith.constant 0 : index
    %c0_37 = arith.constant 0 : index
    %65 = vector.load %arg3[%c0_36, %c0_37] : memref<8x1xi32, #tpu.memory_space<vmem>>, vector<8x1xi32>
    %66 = tpu.iota {dimensions = array<i32: 1>} : vector<8x128xi32>
    %67 = vector.broadcast %65 : vector<8x1xi32> to vector<8x128xi32>
    %68 = arith.cmpi eq, %66, %67 : vector<8x128xi32>
    %cst_38 = arith.constant 0.000000e+00 : f32
    %69 = vector.broadcast %cst_38 : f32 to vector<8x128xf32>
    %70 = arith.select %68, %54, %69 : vector<8x128xi1>, vector<8x128xf32>
    %cst_39 = arith.constant dense<0.000000e+00> : vector<8xf32>
    %71 = vector.multi_reduction <add>, %70, %cst_39 [1] : vector<8x128xf32> to vector<8xf32>
    %72 = vector.shape_cast %71 : vector<8xf32> to vector<8x1xf32>
    %c0_i32 = arith.constant 0 : i32
    %73 = vector.broadcast %c0_i32 : i32 to vector<8x1xi32>
    %74 = arith.cmpi sge, %65, %73 : vector<8x1xi32>
    %75 = arith.extui %74 : vector<8x1xi1> to vector<8x1xi32>
    %76 = arith.sitofp %75 : vector<8x1xi32> to vector<8x1xf32>
    %77 = arith.subf %64, %72 : vector<8x1xf32>
    %78 = arith.mulf %77, %76 : vector<8x1xf32>
    %79 = vector.shape_cast %78 : vector<8x1xf32> to vector<1x8x1xf32>
    %cst_40 = arith.constant dense<0.000000e+00> : vector<1xf32>
    %80 = vector.multi_reduction <add>, %79, %cst_40 [1, 2] : vector<1x8x1xf32> to vector<1xf32>
    %81 = vector.shape_cast %80 : vector<1xf32> to vector<1x1x1xf32>
    %82 = vector.extract %81[0, 0, 0] : f32 from vector<1x1x1xf32>
    %c0_41 = arith.constant 0 : index
    %c0_42 = arith.constant 0 : index
    %83 = vector.load %arg4[%c0_41, %c0_42] : memref<16x32xf32, #tpu.memory_space<vmem>>, vector<16x32xf32>
    %c0_43 = arith.constant 0 : index
    %c0_44 = arith.constant 0 : index
    %84 = vector.load %arg5[%c0_43, %c0_44] : memref<16x32xf32, #tpu.memory_space<vmem>>, vector<16x32xf32>
    %85 = arith.subf %83, %84 : vector<16x32xf32>
    %86 = arith.mulf %85, %85 : vector<16x32xf32>
    %87 = vector.shape_cast %86 : vector<16x32xf32> to vector<1x16x32xf32>
    %cst_45 = arith.constant dense<0.000000e+00> : vector<1xf32>
    %88 = vector.multi_reduction <add>, %87, %cst_45 [1, 2] : vector<1x16x32xf32> to vector<1xf32>
    %89 = vector.shape_cast %88 : vector<1xf32> to vector<1x1x1xf32>
    %90 = vector.extract %89[0, 0, 0] : f32 from vector<1x1x1xf32>
    %91 = tpu.iota {dimensions = array<i32: 0>} : vector<8x128xi32>
    %92 = tpu.iota {dimensions = array<i32: 1>} : vector<8x128xi32>
    %c0_i32_46 = arith.constant 0 : i32
    %93 = vector.broadcast %c0_i32_46 : i32 to vector<8x128xi32>
    %94 = arith.cmpi eq, %91, %93 : vector<8x128xi32>
    %c0_i32_47 = arith.constant 0 : i32
    %95 = vector.broadcast %c0_i32_47 : i32 to vector<8x128xi32>
    %96 = arith.cmpi eq, %92, %95 : vector<8x128xi32>
    %97 = arith.andi %94, %96 : vector<8x128xi1>
    %c0_i32_48 = arith.constant 0 : i32
    %98 = vector.broadcast %c0_i32_48 : i32 to vector<8x128xi32>
    %99 = arith.cmpi eq, %91, %98 : vector<8x128xi32>
    %c1_i32 = arith.constant 1 : i32
    %100 = vector.broadcast %c1_i32 : i32 to vector<8x128xi32>
    %101 = arith.cmpi eq, %92, %100 : vector<8x128xi32>
    %102 = arith.andi %99, %101 : vector<8x128xi1>
    %cst_49 = arith.constant 0.000000e+00 : f32
    %103 = vector.broadcast %90 : f32 to vector<8x128xf32>
    %104 = vector.broadcast %cst_49 : f32 to vector<8x128xf32>
    %105 = arith.select %102, %103, %104 : vector<8x128xi1>, vector<8x128xf32>
    %106 = vector.broadcast %82 : f32 to vector<8x128xf32>
    %107 = arith.select %97, %106, %105 : vector<8x128xi1>, vector<8x128xf32>
    %c0_50 = arith.constant 0 : index
    %c0_51 = arith.constant 0 : index
    %108 = vector.load %arg14[%c0_50, %c0_51] : memref<8x128xf32, #tpu.memory_space<vmem>>, vector<8x128xf32>
    tpu.vector_store %arg14[%c0_50, %c0_51], %107 {strides = array<i32>} : memref<8x128xf32, #tpu.memory_space<vmem>>, vector<8x128xf32>,
    return
  }
  func.func @transform_0(%arg0: i32) -> (i32, i32) {
    %c0_i32 = arith.constant 0 : i32
    %c0_i32_0 = arith.constant 0 : i32
    return %arg0, %c0_i32 : i32, i32
  }
  func.func @transform_1(%arg0: i32) -> (i32, i32) {
    %c0_i32 = arith.constant 0 : i32
    %c0_i32_0 = arith.constant 0 : i32
    return %arg0, %c0_i32 : i32, i32
  }
  func.func @transform_2(%arg0: i32) -> (i32, i32) {
    %c0_i32 = arith.constant 0 : i32
    %c0_i32_0 = arith.constant 0 : i32
    return %arg0, %c0_i32 : i32, i32
  }
  func.func @transform_3(%arg0: i32) -> (i32, i32) {
    %c0_i32 = arith.constant 0 : i32
    %c0_i32_0 = arith.constant 0 : i32
    return %arg0, %c0_i32 : i32, i32
  }
  func.func @transform_4(%arg0: i32) -> (i32, i32) {
    %c0_i32 = arith.constant 0 : i32
    %c0_i32_0 = arith.constant 0 : i32
    return %arg0, %c0_i32 : i32, i32
  }
  func.func @transform_5(%arg0: i32) -> (i32, i32) {
    %c0_i32 = arith.constant 0 : i32
    %c0_i32_0 = arith.constant 0 : i32
    %c0_i32_1 = arith.constant 0 : i32
    return %c0_i32, %c0_i32_0 : i32, i32
  }
  func.func @transform_6(%arg0: i32) -> (i32, i32) {
    %c0_i32 = arith.constant 0 : i32
    %c0_i32_0 = arith.constant 0 : i32
    %c0_i32_1 = arith.constant 0 : i32
    return %c0_i32, %c0_i32_0 : i32, i32
  }
  func.func @transform_7(%arg0: i32) -> (i32, i32) {
    %c0_i32 = arith.constant 0 : i32
    %c0_i32_0 = arith.constant 0 : i32
    %c0_i32_1 = arith.constant 0 : i32
    return %c0_i32, %c0_i32_0 : i32, i32
  }
  func.func @transform_8(%arg0: i32) -> (i32, i32) {
    %c0_i32 = arith.constant 0 : i32
    %c0_i32_0 = arith.constant 0 : i32
    %c0_i32_1 = arith.constant 0 : i32
    return %c0_i32, %c0_i32_0 : i32, i32
  }
  func.func @transform_9(%arg0: i32) -> (i32, i32) {
    %c0_i32 = arith.constant 0 : i32
    %c0_i32_0 = arith.constant 0 : i32
    %c0_i32_1 = arith.constant 0 : i32
    return %c0_i32, %c0_i32_0 : i32, i32
  }
  func.func @transform_10(%arg0: i32) -> (i32, i32) {
    %c0_i32 = arith.constant 0 : i32
    %c0_i32_0 = arith.constant 0 : i32
    %c0_i32_1 = arith.constant 0 : i32
    return %c0_i32, %c0_i32_0 : i32, i32
  }
  func.func @transform_11(%arg0: i32) -> (i32, i32) {
    %c0_i32 = arith.constant 0 : i32
    %c0_i32_0 = arith.constant 0 : i32
    %c0_i32_1 = arith.constant 0 : i32
    return %c0_i32, %c0_i32_0 : i32, i32
  }
  func.func @transform_12(%arg0: i32) -> (i32, i32) {
    %c0_i32 = arith.constant 0 : i32
    %c0_i32_0 = arith.constant 0 : i32
    return %arg0, %c0_i32 : i32, i32
  }
  func.func @transform_13(%arg0: i32) -> (i32, i32) {
    %c0_i32 = arith.constant 0 : i32
    %c0_i32_0 = arith.constant 0 : i32
    return %arg0, %c0_i32 : i32, i32
  }
}

</mosaic_0001>

<llo_original>
// kernel: run.1
$region0: #{run.1}
  #allocation0 [shape = 'u32[]', space=smem, size = 0x4, offset = 0x4, fixed_abs, tag = 'smem constant byte address 0x4 - core index']
  #allocation1 [shape = 'u32[144,128]{1,0:T(1,128)}', space=vmem, size = 0x12000, scoped, tag = 'internal scratch']
  %s0 = inlined_call_operand.vmem [shape: f32[32,32], index: 0, kind: input, shape index: {}]
  %s1 = inlined_call_operand.vmem [shape: f32[16,16], index: 1, kind: input, shape index: {}]
  %s2 = inlined_call_operand.vmem [shape: s32[16,1], index: 2, kind: input, shape index: {}]
  %s3 = inlined_call_operand.vmem [shape: f32[32,32], index: 3, kind: input, shape index: {}]
  %s4 = inlined_call_operand.vmem [shape: f32[32,32], index: 4, kind: input, shape index: {}]
  %s5 = inlined_call_operand.vmem [shape: bf16[32,32], index: 5, kind: input, shape index: {}]
  %s6 = inlined_call_operand.vmem [shape: bf16[32,32], index: 6, kind: input, shape index: {}]
  %s7 = inlined_call_operand.vmem [shape: bf16[32,32], index: 7, kind: input, shape index: {}]
  %s8 = inlined_call_operand.vmem [shape: bf16[32,32], index: 8, kind: input, shape index: {}]
  %s9 = inlined_call_operand.vmem [shape: bf16[32,128], index: 9, kind: input, shape index: {}]
  %s10 = inlined_call_operand.vmem [shape: bf16[128,128], index: 10, kind: input, shape index: {}]
  %s11 = inlined_call_operand.vmem [shape: bf16[32,128], index: 11, kind: input, shape index: {}]
  %s12 = inlined_call_operand.hbm [shape: f32[16,128], index: 12, kind: output, shape index: {0}]
  %s13 = inlined_call_operand.vmem [shape: f32[16,128], index: 13, kind: output, shape index: {1}]
  %14 = xla_tuple %s12, %s13
  %s15 = sld [smem:[#allocation0]]
  $region89: #{run.1} parent=0
    _
  %s17 = ssub.s32 1, %s15
  %s18 = scalar_select 0, %s17, %s15
  $region1: #{run.1} parent=0
    #allocation2 [shape = 'u8[8192]{0}', space=vmem, size = 0x2000, scoped, tag = 'output window, operand 0']
    #allocation3 [shape = 's32[2]{0}', space=sflag, size = 0x8, scoped, tag = 'scoped memory for run.1']
    %19 = vsyncpa [#allocation3], 0
    %s20 = scalar_lea.sflag [#allocation3], 1
    %21 = vsyncpa %s20, 0
    loop: start=0, step=1, limit=4
    $region2: #{run.1} parent=1 // loop_pre_header
      _
    $region3: #{run.1} parent=1 // loop_header
      %s23 = sphi 0, %s27
      %p24 = scmp.ge.s32.totalorder %s23, 4
      %s33 = sphi 0, %s35
      %s36 = sphi 0, %s33
      %s37 = sphi 0, %s36
      %s53 = sphi 0, %s37
      %s59 = sphi 0, %s61
      %s62 = sphi 0, %s59
      %s63 = sphi 0, %s62
      %s79 = sphi 0, %s63
      %s85 = sphi 0, %s87
      %s88 = sphi 0, %s85
      %s89 = sphi 0, %s88
      %s105 = sphi 0, %s89
      %s111 = sphi 0, %s113
      %s114 = sphi 0, %s111
      %s115 = sphi 0, %s114
      %s131 = sphi 0, %s115
      %s137 = sphi 0, %s139
      %s140 = sphi 0, %s137
      %s141 = sphi 0, %s140
      %s157 = sphi 0, %s141
      %s161 = sphi 0, %s161
      %s163 = sphi 0, %s161
      %s164 = sphi 0, %s163
      %s178 = sphi 0, %s164
      %s182 = sphi 0, %s182
      %s184 = sphi 0, %s182
      %s185 = sphi 0, %s184
      %s199 = sphi 0, %s185
      %s203 = sphi 0, %s203
      %s205 = sphi 0, %s203
      %s206 = sphi 0, %s205
      %s220 = sphi 0, %s206
      %s224 = sphi 0, %s224
      %s226 = sphi 0, %s224
      %s227 = sphi 0, %s226
      %s241 = sphi 0, %s227
      %s245 = sphi 0, %s245
      %s247 = sphi 0, %s245
      %s248 = sphi 0, %s247
      %s262 = sphi 0, %s248
      %s266 = sphi 0, %s266
      %s268 = sphi 0, %s266
      %s269 = sphi 0, %s268
      %s283 = sphi 0, %s269
      %s287 = sphi 0, %s287
      %s289 = sphi 0, %s287
      %s290 = sphi 0, %s289
      %s304 = sphi 0, %s290
      %s310 = sphi 0, %s312
      %s313 = sphi 0, %s310
      %s314 = sphi 0, %s313
      %s330 = sphi 0, %s314
      %s336 = sphi 0, %s338
      %s339 = sphi 0, %s336
      %s340 = sphi 0, %s339
      %s356 = sphi 0, %s340
    $region4: #{run.1} parent=1 // loop_header_branch
      %26 = sbr.rel (%p24) target = $region8
    $region5: #{run.1} parent=1 // loop_body
      %s28 = ssub.s32 %s23, 1
      %s29 = ssub.s32 %s23, 2
      %s30 = sadd.s32 %s23, 1
      %s31 = ssub.s32 %s23, %s30
      %p32 = scmp.eq.s32.totalorder %s31, 0
      %s34 = sadd.s32 %s33, 1
      %s35 = scalar_select %p32, %s33, %s34
      %p38 = pneg %p32
      %p39 = scmp.eq.s32.totalorder %s23, 1
      %p40 = por %p38, %p39
      %p41 = scmp.ne.s32.totalorder %s33, %s36
      %p42 = scmp.eq.s32.totalorder %s23, 0
      %p43 = por %p41, %p42
      %p44 = scmp.ne.s32.totalorder %s33, %s36
      %p45 = scmp.eq.s32.totalorder %s28, 1
      %p46 = por %p44, %p45
      %p47 = scmp.ne.s32.totalorder %s36, %s37
      %p48 = scmp.eq.s32.totalorder %s28, 0
      %p49 = por %p47, %p48
      %p50 = scmp.ne.s32.totalorder %s36, %s37
      %p51 = scmp.eq.s32.totalorder %s29, 1
      %p52 = por %p50, %p51
      %p54 = scmp.ne.s32.totalorder %s37, %s53
      %p55 = scmp.eq.s32.totalorder %s29, 0
      %p56 = por %p54, %p55
      %s57 = ssub.s32 %s23, %s30
      %p58 = scmp.eq.s32.totalorder %s57, 0
      %s60 = sadd.s32 %s59, 1
      %s61 = scalar_select %p58, %s59, %s60
      %p64 = pneg %p58
      %p65 = scmp.eq.s32.totalorder %s23, 1
      %p66 = por %p64, %p65
      %p67 = scmp.ne.s32.totalorder %s59, %s62
      %p68 = scmp.eq.s32.totalorder %s23, 0
      %p69 = por %p67, %p68
      %p70 = scmp.ne.s32.totalorder %s59, %s62
      %p71 = scmp.eq.s32.totalorder %s28, 1
      %p72 = por %p70, %p71
      %p73 = scmp.ne.s32.totalorder %s62, %s63
      %p74 = scmp.eq.s32.totalorder %s28, 0
      %p75 = por %p73, %p74
      %p76 = scmp.ne.s32.totalorder %s62, %s63
      %p77 = scmp.eq.s32.totalorder %s29, 1
      %p78 = por %p76, %p77
      %p80 = scmp.ne.s32.totalorder %s63, %s79
      %p81 = scmp.eq.s32.totalorder %s29, 0
      %p82 = por %p80, %p81
      %s83 = ssub.s32 %s23, %s30
      %p84 = scmp.eq.s32.totalorder %s83, 0
      %s86 = sadd.s32 %s85, 1
      %s87 = scalar_select %p84, %s85, %s86
      %p90 = pneg %p84
      %p91 = scmp.eq.s32.totalorder %s23, 1
      %p92 = por %p90, %p91
      %p93 = scmp.ne.s32.totalorder %s85, %s88
      %p94 = scmp.eq.s32.totalorder %s23, 0
      %p95 = por %p93, %p94
      %p96 = scmp.ne.s32.totalorder %s85, %s88
      %p97 = scmp.eq.s32.totalorder %s28, 1
      %p98 = por %p96, %p97
      %p99 = scmp.ne.s32.totalorder %s88, %s89
      %p100 = scmp.eq.s32.totalorder %s28, 0
      %p101 = por %p99, %p100
      %p102 = scmp.ne.s32.totalorder %s88, %s89
      %p103 = scmp.eq.s32.totalorder %s29, 1
      %p104 = por %p102, %p103
      %p106 = scmp.ne.s32.totalorder %s89, %s105
      %p107 = scmp.eq.s32.totalorder %s29, 0
      %p108 = por %p106, %p107
      %s109 = ssub.s32 %s23, %s30
      %p110 = scmp.eq.s32.totalorder %s109, 0
      %s112 = sadd.s32 %s111, 1
      %s113 = scalar_select %p110, %s111, %s112
      %p116 = pneg %p110
      %p117 = scmp.eq.s32.totalorder %s23, 1
      %p118 = por %p116, %p117
      %p119 = scmp.ne.s32.totalorder %s111, %s114
      %p120 = scmp.eq.s32.totalorder %s23, 0
      %p121 = por %p119, %p120
      %p122 = scmp.ne.s32.totalorder %s111, %s114
      %p123 = scmp.eq.s32.totalorder %s28, 1
      %p124 = por %p122, %p123
      %p125 = scmp.ne.s32.totalorder %s114, %s115
      %p126 = scmp.eq.s32.totalorder %s28, 0
      %p127 = por %p125, %p126
      %p128 = scmp.ne.s32.totalorder %s114, %s115
      %p129 = scmp.eq.s32.totalorder %s29, 1
      %p130 = por %p128, %p129
      %p132 = scmp.ne.s32.totalorder %s115, %s131
      %p133 = scmp.eq.s32.totalorder %s29, 0
      %p134 = por %p132, %p133
      %s135 = ssub.s32 %s23, %s30
      %p136 = scmp.eq.s32.totalorder %s135, 0
      %s138 = sadd.s32 %s137, 1
      %s139 = scalar_select %p136, %s137, %s138
      %p142 = pneg %p136
      %p143 = scmp.eq.s32.totalorder %s23, 1
      %p144 = por %p142, %p143
      %p145 = scmp.ne.s32.totalorder %s137, %s140
      %p146 = scmp.eq.s32.totalorder %s23, 0
      %p147 = por %p145, %p146
      %p148 = scmp.ne.s32.totalorder %s137, %s140
      %p149 = scmp.eq.s32.totalorder %s28, 1
      %p150 = por %p148, %p149
      %p151 = scmp.ne.s32.totalorder %s140, %s141
      %p152 = scmp.eq.s32.totalorder %s28, 0
      %p153 = por %p151, %p152
      %p154 = scmp.ne.s32.totalorder %s140, %s141
      %p155 = scmp.eq.s32.totalorder %s29, 1
      %p156 = por %p154, %p155
      %p158 = scmp.ne.s32.totalorder %s141, %s157
      %p159 = scmp.eq.s32.totalorder %s29, 0
      %p160 = por %p158, %p159
      %s162 = sadd.s32 %s161, 1
      %p165 = scmp.eq.s32.totalorder %s23, 1
      %p166 = scmp.ne.s32.totalorder %s161, %s163
      %p167 = scmp.eq.s32.totalorder %s23, 0
      %p168 = por %p166, %p167
      %p169 = scmp.ne.s32.totalorder %s161, %s163
      %p170 = scmp.eq.s32.totalorder %s28, 1
      %p171 = por %p169, %p170
      %p172 = scmp.ne.s32.totalorder %s163, %s164
      %p173 = scmp.eq.s32.totalorder %s28, 0
      %p174 = por %p172, %p173
      %p175 = scmp.ne.s32.totalorder %s163, %s164
      %p176 = scmp.eq.s32.totalorder %s29, 1
      %p177 = por %p175, %p176
      %p179 = scmp.ne.s32.totalorder %s164, %s178
      %p180 = scmp.eq.s32.totalorder %s29, 0
      %p181 = por %p179, %p180
      %s183 = sadd.s32 %s182, 1
      %p186 = scmp.eq.s32.totalorder %s23, 1
      %p187 = scmp.ne.s32.totalorder %s182, %s184
      %p188 = scmp.eq.s32.totalorder %s23, 0
      %p189 = por %p187, %p188
      %p190 = scmp.ne.s32.totalorder %s182, %s184
      %p191 = scmp.eq.s32.totalorder %s28, 1
      %p192 = por %p190, %p191
      %p193 = scmp.ne.s32.totalorder %s184, %s185
      %p194 = scmp.eq.s32.totalorder %s28, 0
      %p195 = por %p193, %p194
      %p196 = scmp.ne.s32.totalorder %s184, %s185
      %p197 = scmp.eq.s32.totalorder %s29, 1
      %p198 = por %p196, %p197
      %p200 = scmp.ne.s32.totalorder %s185, %s199
      %p201 = scmp.eq.s32.totalorder %s29, 0
      %p202 = por %p200, %p201
      %s204 = sadd.s32 %s203, 1
      %p207 = scmp.eq.s32.totalorder %s23, 1
      %p208 = scmp.ne.s32.totalorder %s203, %s205
      %p209 = scmp.eq.s32.totalorder %s23, 0
      %p210 = por %p208, %p209
      %p211 = scmp.ne.s32.totalorder %s203, %s205
      %p212 = scmp.eq.s32.totalorder %s28, 1
      %p213 = por %p211, %p212
      %p214 = scmp.ne.s32.totalorder %s205, %s206
      %p215 = scmp.eq.s32.totalorder %s28, 0
      %p216 = por %p214, %p215
      %p217 = scmp.ne.s32.totalorder %s205, %s206
      %p218 = scmp.eq.s32.totalorder %s29, 1
      %p219 = por %p217, %p218
      %p221 = scmp.ne.s32.totalorder %s206, %s220
      %p222 = scmp.eq.s32.totalorder %s29, 0
      %p223 = por %p221, %p222
      %s225 = sadd.s32 %s224, 1
      %p228 = scmp.eq.s32.totalorder %s23, 1
      %p229 = scmp.ne.s32.totalorder %s224, %s226
      %p230 = scmp.eq.s32.totalorder %s23, 0
      %p231 = por %p229, %p230
      %p232 = scmp.ne.s32.totalorder %s224, %s226
      %p233 = scmp.eq.s32.totalorder %s28, 1
      %p234 = por %p232, %p233
      %p235 = scmp.ne.s32.totalorder %s226, %s227
      %p236 = scmp.eq.s32.totalorder %s28, 0
      %p237 = por %p235, %p236
      %p238 = scmp.ne.s32.totalorder %s226, %s227
      %p239 = scmp.eq.s32.totalorder %s29, 1
      %p240 = por %p238, %p239
      %p242 = scmp.ne.s32.totalorder %s227, %s241
      %p243 = scmp.eq.s32.totalorder %s29, 0
      %p244 = por %p242, %p243
      %s246 = sadd.s32 %s245, 1
      %p249 = scmp.eq.s32.totalorder %s23, 1
      %p250 = scmp.ne.s32.totalorder %s245, %s247
      %p251 = scmp.eq.s32.totalorder %s23, 0
      %p252 = por %p250, %p251
      %p253 = scmp.ne.s32.totalorder %s245, %s247
      %p254 = scmp.eq.s32.totalorder %s28, 1
      %p255 = por %p253, %p254
      %p256 = scmp.ne.s32.totalorder %s247, %s248
      %p257 = scmp.eq.s32.totalorder %s28, 0
      %p258 = por %p256, %p257
      %p259 = scmp.ne.s32.totalorder %s247, %s248
      %p260 = scmp.eq.s32.totalorder %s29, 1
      %p261 = por %p259, %p260
      %p263 = scmp.ne.s32.totalorder %s248, %s262
      %p264 = scmp.eq.s32.totalorder %s29, 0
      %p265 = por %p263, %p264
      %s267 = sadd.s32 %s266, 1
      %p270 = scmp.eq.s32.totalorder %s23, 1
      %p271 = scmp.ne.s32.totalorder %s266, %s268
      %p272 = scmp.eq.s32.totalorder %s23, 0
      %p273 = por %p271, %p272
      %p274 = scmp.ne.s32.totalorder %s266, %s268
      %p275 = scmp.eq.s32.totalorder %s28, 1
      %p276 = por %p274, %p275
      %p277 = scmp.ne.s32.totalorder %s268, %s269
      %p278 = scmp.eq.s32.totalorder %s28, 0
      %p279 = por %p277, %p278
      %p280 = scmp.ne.s32.totalorder %s268, %s269
      %p281 = scmp.eq.s32.totalorder %s29, 1
      %p282 = por %p280, %p281
      %p284 = scmp.ne.s32.totalorder %s269, %s283
      %p285 = scmp.eq.s32.totalorder %s29, 0
      %p286 = por %p284, %p285
      %s288 = sadd.s32 %s287, 1
      %p291 = scmp.eq.s32.totalorder %s23, 1
      %p292 = scmp.ne.s32.totalorder %s287, %s289
      %p293 = scmp.eq.s32.totalorder %s23, 0
      %p294 = por %p292, %p293
      %p295 = scmp.ne.s32.totalorder %s287, %s289
      %p296 = scmp.eq.s32.totalorder %s28, 1
      %p297 = por %p295, %p296
      %p298 = scmp.ne.s32.totalorder %s289, %s290
      %p299 = scmp.eq.s32.totalorder %s28, 0
      %p300 = por %p298, %p299
      %p301 = scmp.ne.s32.totalorder %s289, %s290
      %p302 = scmp.eq.s32.totalorder %s29, 1
      %p303 = por %p301, %p302
      %p305 = scmp.ne.s32.totalorder %s290, %s304
      %p306 = scmp.eq.s32.totalorder %s29, 0
      %p307 = por %p305, %p306
      %s308 = ssub.s32 %s23, %s30
      %p309 = scmp.eq.s32.totalorder %s308, 0
      %s311 = sadd.s32 %s310, 1
      %s312 = scalar_select %p309, %s310, %s311
      %p315 = pneg %p309
      %p316 = scmp.eq.s32.totalorder %s23, 1
      %p317 = por %p315, %p316
      %p318 = scmp.ne.s32.totalorder %s310, %s313
      %p319 = scmp.eq.s32.totalorder %s23, 0
      %p320 = por %p318, %p319
      %p321 = scmp.ne.s32.totalorder %s310, %s313
      %p322 = scmp.eq.s32.totalorder %s28, 1
      %p323 = por %p321, %p322
      %p324 = scmp.ne.s32.totalorder %s313, %s314
      %p325 = scmp.eq.s32.totalorder %s28, 0
      %p326 = por %p324, %p325
      %p327 = scmp.ne.s32.totalorder %s313, %s314
      %p328 = scmp.eq.s32.totalorder %s29, 1
      %p329 = por %p327, %p328
      %p331 = scmp.ne.s32.totalorder %s314, %s330
      %p332 = scmp.eq.s32.totalorder %s29, 0
      %p333 = por %p331, %p332
      %s334 = ssub.s32 %s23, %s30
      %p335 = scmp.eq.s32.totalorder %s334, 0
      %s337 = sadd.s32 %s336, 1
      %s338 = scalar_select %p335, %s336, %s337
      %p341 = pneg %p335
      %p342 = scmp.eq.s32.totalorder %s23, 1
      %p343 = por %p341, %p342
      %p344 = scmp.ne.s32.totalorder %s336, %s339
      %p345 = scmp.eq.s32.totalorder %s23, 0
      %p346 = por %p344, %p345
      %p347 = scmp.ne.s32.totalorder %s336, %s339
      %p348 = scmp.eq.s32.totalorder %s28, 1
      %p349 = por %p347, %p348
      %p350 = scmp.ne.s32.totalorder %s339, %s340
      %p351 = scmp.eq.s32.totalorder %s28, 0
      %p352 = por %p350, %p351
      %p353 = scmp.ne.s32.totalorder %s339, %s340
      %p354 = scmp.eq.s32.totalorder %s29, 1
      %p355 = por %p353, %p354
      %p357 = scmp.ne.s32.totalorder %s340, %s356
      %p358 = scmp.eq.s32.totalorder %s29, 0
      %p359 = por %p357, %p358
      %p360 = scmp.le.s32.totalorder 1, %s23
      %p361 = scmp.lt.s32.totalorder %s23, 3
      %p362 = pnand %p360, %p361
      %p363 = pneg %p362
      // Predicated region
      $region9: #{run.1} parent=5 // pred_check
        _
      $region10: #{run.1} parent=5 // pred_check_branch
        %365 = sbr.rel (%p362) target = $region12
      $region11: #{run.1} parent=5 // pred_region
        %s366 = ssub.s32 %s23, 1
        // Predicated region
        $region13: #{run.1} parent=11 // pred_check
          %p367 = pneg %p174
        $region14: #{run.1} parent=11 // pred_check_branch
          %369 = sbr.rel (%p367) target = $region16
        $region15: #{run.1} parent=11 // pred_region
          _
        $region16: #{run.1} parent=11 // pred_fallthru
          _
        // Predicated region
        $region17: #{run.1} parent=11 // pred_check
          %p370 = pneg %p195
        $region18: #{run.1} parent=11 // pred_check_branch
          %372 = sbr.rel (%p370) target = $region20
        $region19: #{run.1} parent=11 // pred_region
          _
        $region20: #{run.1} parent=11 // pred_fallthru
          _
        // Predicated region
        $region21: #{run.1} parent=11 // pred_check
          %p373 = pneg %p216
        $region22: #{run.1} parent=11 // pred_check_branch
          %375 = sbr.rel (%p373) target = $region24
        $region23: #{run.1} parent=11 // pred_region
          _
        $region24: #{run.1} parent=11 // pred_fallthru
          _
        // Predicated region
        $region25: #{run.1} parent=11 // pred_check
          %p376 = pneg %p237
        $region26: #{run.1} parent=11 // pred_check_branch
          %378 = sbr.rel (%p376) target = $region28
        $region27: #{run.1} parent=11 // pred_region
          _
        $region28: #{run.1} parent=11 // pred_fallthru
          _
        // Predicated region
        $region29: #{run.1} parent=11 // pred_check
          %p379 = pneg %p258
        $region30: #{run.1} parent=11 // pred_check_branch
          %381 = sbr.rel (%p379) target = $region32
        $region31: #{run.1} parent=11 // pred_region
          _
        $region32: #{run.1} parent=11 // pred_fallthru
          _
        // Predicated region
        $region33: #{run.1} parent=11 // pred_check
          %p382 = pneg %p279
        $region34: #{run.1} parent=11 // pred_check_branch
          %384 = sbr.rel (%p382) target = $region36
        $region35: #{run.1} parent=11 // pred_region
          _
        $region36: #{run.1} parent=11 // pred_fallthru
          _
        // Predicated region
        $region37: #{run.1} parent=11 // pred_check
          %p385 = pneg %p300
        $region38: #{run.1} parent=11 // pred_check_branch
          %387 = sbr.rel (%p385) target = $region40
        $region39: #{run.1} parent=11 // pred_region
          _
        $region40: #{run.1} parent=11 // pred_fallthru
          _
      $region12: #{run.1} parent=5 // pred_fallthru
        _
      %p388 = scmp.lt.s32.totalorder %s23, 2
      // Predicated region
      $region41: #{run.1} parent=5 // pred_check
        %p389 = pneg %p388
      $region42: #{run.1} parent=5 // pred_check_branch
        %391 = sbr.rel (%p389) target = $region44
      $region43: #{run.1} parent=5 // pred_region
        // Predicated region
        $region45: #{run.1} parent=43 // pred_check
          %p392 = pneg %p43
        $region46: #{run.1} parent=43 // pred_check_branch
          %394 = sbr.rel (%p392) target = $region48
        $region47: #{run.1} parent=43 // pred_region
          %s395 = smul.u32 2, %s23
          %p396 = scmp.lt.s32.totalorder %s395, 3
          %s397 = scalar_select %p396, %s395, 3
          %s398 = smul.addr %s397, 8
          %s399 = scalar_lea.vmem %s0, %s398
          %s400 = smul.u32 2, %s23
        $region48: #{run.1} parent=43 // pred_fallthru
          _
        // Predicated region
        $region49: #{run.1} parent=43 // pred_check
          %p401 = pneg %p69
        $region50: #{run.1} parent=43 // pred_check_branch
          %403 = sbr.rel (%p401) target = $region52
        $region51: #{run.1} parent=43 // pred_region
          %p404 = scmp.lt.s32.totalorder %s23, 1
          %s405 = scalar_select %p404, %s23, 1
          %s406 = smul.addr %s405, 8
          %s407 = scalar_lea.vmem %s1, %s406
        $region52: #{run.1} parent=43 // pred_fallthru
          _
        // Predicated region
        $region53: #{run.1} parent=43 // pred_check
          %p408 = pneg %p95
        $region54: #{run.1} parent=43 // pred_check_branch
          %410 = sbr.rel (%p408) target = $region56
        $region55: #{run.1} parent=43 // pred_region
          %p411 = scmp.lt.s32.totalorder %s23, 1
          %s412 = scalar_select %p411, %s23, 1
          %s413 = smul.addr %s412, 8
          %s414 = scalar_lea.vmem %s2, %s413
        $region56: #{run.1} parent=43 // pred_fallthru
          _
        // Predicated region
        $region57: #{run.1} parent=43 // pred_check
          %p415 = pneg %p121
        $region58: #{run.1} parent=43 // pred_check_branch
          %417 = sbr.rel (%p415) target = $region60
        $region59: #{run.1} parent=43 // pred_region
          %s418 = smul.u32 2, %s23
          %p419 = scmp.lt.s32.totalorder %s418, 3
          %s420 = scalar_select %p419, %s418, 3
          %s421 = smul.addr %s420, 8
          %s422 = scalar_lea.vmem %s3, %s421
          %s423 = smul.u32 2, %s23
        $region60: #{run.1} parent=43 // pred_fallthru
          _
        // Predicated region
        $region61: #{run.1} parent=43 // pred_check
          %p424 = pneg %p147
        $region62: #{run.1} parent=43 // pred_check_branch
          %426 = sbr.rel (%p424) target = $region64
        $region63: #{run.1} parent=43 // pred_region
          %s427 = smul.u32 2, %s23
          %p428 = scmp.lt.s32.totalorder %s427, 3
          %s429 = scalar_select %p428, %s427, 3
          %s430 = smul.addr %s429, 8
          %s431 = scalar_lea.vmem %s4, %s430
          %s432 = smul.u32 2, %s23
        $region64: #{run.1} parent=43 // pred_fallthru
          _
      $region44: #{run.1} parent=5 // pred_fallthru
        _
      %p433 = scmp.le.s32.totalorder 1, %s23
      %p434 = scmp.lt.s32.totalorder %s23, 3
      %p435 = pnand %p433, %p434
      %p436 = pneg %p435
      // Predicated region
      $region65: #{run.1} parent=5 // pred_check
        _
      $region66: #{run.1} parent=5 // pred_check_branch
        %438 = sbr.rel (%p435) target = $region68
      $region67: #{run.1} parent=5 // pred_region
        %s439 = ssub.s32 %s23, 1
        %s440 = smul.u32 2, %s28
        %p441 = scmp.lt.s32.totalorder %s440, 3
        %s442 = scalar_select %p441, %s440, 3
        %s443 = smul.addr %s442, 8
        %s444 = scalar_lea.vmem %s0, %s443
        %p445 = pneg %p49
        %p446 = pneg %p46
        %p447 = scmp.lt.s32.totalorder %s28, 1
        %s448 = scalar_select %p447, %s28, 1
        %s449 = smul.addr %s448, 8
        %s450 = scalar_lea.vmem %s1, %s449
        %p451 = pneg %p75
        %p452 = pneg %p72
        %p453 = scmp.lt.s32.totalorder %s28, 1
        %s454 = scalar_select %p453, %s28, 1
        %s455 = smul.addr %s454, 8
        %s456 = scalar_lea.vmem %s2, %s455
        %p457 = pneg %p101
        %p458 = pneg %p98
        %s459 = smul.u32 2, %s28
        %p460 = scmp.lt.s32.totalorder %s459, 3
        %s461 = scalar_select %p460, %s459, 3
        %s462 = smul.addr %s461, 8
        %s463 = scalar_lea.vmem %s3, %s462
        %p464 = pneg %p127
        %p465 = pneg %p124
        %s466 = smul.u32 2, %s28
        %p467 = scmp.lt.s32.totalorder %s466, 3
        %s468 = scalar_select %p467, %s466, 3
        %s469 = smul.addr %s468, 8
        %s470 = scalar_lea.vmem %s4, %s469
        %p471 = pneg %p153
        %p472 = pneg %p150
        %p473 = pneg %p174
        %p474 = pneg %p171
        %p475 = pneg %p195
        %p476 = pneg %p192
        %p477 = pneg %p216
        %p478 = pneg %p213
        %p479 = pneg %p237
        %p480 = pneg %p234
        %p481 = pneg %p258
        %p482 = pneg %p255
        %p483 = pneg %p279
        %p484 = pneg %p276
        %p485 = pneg %p300
        %p486 = pneg %p297
        %p487 = pneg %p326
        %p488 = pneg %p323
        %s489 = sand.u32 %s313, 1
        %s490 = scalar_lea.sflag [#allocation3], %s489
        %s491 = sand.u32 %s313, 1
        %s492 = smul.addr %s491, 8
        %s493 = scalar_lea.vmem [#allocation2], %s492
        %p494 = pneg %p352
        %p495 = pneg %p349
        %p496 = scmp.lt.s32.totalorder %s28, 1
        %s497 = scalar_select %p496, %s28, 1
        %s498 = smul.addr %s497, 8
        %s499 = scalar_lea.vmem %s13, %s498
        %s500 = smul.u32 2, %s28
        %p501 = scmp.lt.s32.totalorder %s500, 3
        %s502 = scalar_select %p501, %s500, 3
        %s503 = smul.addr %s502, 8
        %s504 = scalar_lea.vmem %s0, %s503
        %s505 = smul.u32 2, %s28
        %p506 = scmp.lt.s32.totalorder %s28, 1
        %s507 = scalar_select %p506, %s28, 1
        %s508 = smul.addr %s507, 8
        %s509 = scalar_lea.vmem %s1, %s508
        %p510 = scmp.lt.s32.totalorder %s28, 1
        %s511 = scalar_select %p510, %s28, 1
        %s512 = smul.addr %s511, 8
        %s513 = scalar_lea.vmem %s2, %s512
        %s514 = smul.u32 2, %s28
        %p515 = scmp.lt.s32.totalorder %s514, 3
        %s516 = scalar_select %p515, %s514, 3
        %s517 = smul.addr %s516, 8
        %s518 = scalar_lea.vmem %s3, %s517
        %s519 = smul.u32 2, %s28
        %s520 = smul.u32 2, %s28
        %p521 = scmp.lt.s32.totalorder %s520, 3
        %s522 = scalar_select %p521, %s520, 3
        %s523 = smul.addr %s522, 8
        %s524 = scalar_lea.vmem %s4, %s523
        %s525 = smul.u32 2, %s28
        %p526 = scmp.lt.s32.totalorder %s28, 1
        %s527 = scalar_select %p526, %s28, 1
        %s528 = smul.addr %s527, 8
        %s529 = scalar_lea.vmem %s13, %s528
        %v531 = vld [vmem:[%s504] sm:$0xff]
        %v532 = vld [vmem:[%s504 + $0x8] sm:$0xff]
        %v533 = vpack.c.bf16 %v532, %v531
        %v534 = vld [vmem:[%s5] sm:$0xf]
        %v535 = vld [vmem:[%s5 + $0x4] sm:$0xf]
        %v536 = vld [vmem:[%s5 + $0x8] sm:$0xf]
        %v537 = vld [vmem:[%s5 + $0xc] sm:$0xf]
        %v539 = vrot.slane %v533, 4
        %v544 = vunpack.c.l.b16 %v534
        %v545 = vunpack.c.l.b16 %v535
        %v546 = vunpack.c.l.b16 %v536
        %v547 = vunpack.c.l.b16 %v537
        %v548 = vpack.c.b16 %v545, %v544
        %v549 = vpack.c.b16 %v547, %v546
        %vm552 = vcmask 261120
        %v554 = vsel %vm552, %v539, 0
        %556 = vmatprep.subr.bf16.mxu0 0
        %557 = vmatpush1.bf16.msra.mxu0 %v548
        %558 = vmatprep.subr.bf16.mxu0 0
        %559 = vmatpush1.bf16.msra.mxu0 %v549
        %560 = vmatprep.subr.bf16.mxu0 0
        %561 = vmatpush1.bf16.msra.mxu0 0
        %562 = vmatprep.subr.bf16.mxu0 0
        %563 = vmatpush1.bf16.msra.mxu0 0
        %564 = vmatprep.subr.bf16.mxu0 0
        %565 = vmatpush1.bf16.msra.mxu0 0
        %566 = vmatprep.subr.bf16.mxu0 0
        %567 = vmatpush1.bf16.msra.mxu0 0
        %568 = vmatprep.subr.bf16.mxu0 0
        %569 = vmatpush1.bf16.msra.mxu0 0
        %570 = vmatprep.subr.bf16.mxu0 0
        %571 = vmatpush1.bf16.msra.mxu0 0
        %572 = vmatprep.subr.bf16.mxu0 0
        %573 = vmatpush1.bf16.msra.mxu0 0
        %574 = vmatprep.subr.bf16.mxu0 0
        %575 = vmatpush1.bf16.msra.mxu0 0
        %576 = vmatprep.subr.bf16.mxu0 0
        %577 = vmatpush1.bf16.msra.mxu0 0
        %578 = vmatprep.subr.bf16.mxu0 0
        %579 = vmatpush1.bf16.msra.mxu0 0
        %580 = vmatprep.subr.bf16.mxu0 0
        %581 = vmatpush1.bf16.msra.mxu0 0
        %582 = vmatprep.subr.bf16.mxu0 0
        %583 = vmatpush1.bf16.msra.mxu0 0
        %584 = vmatprep.subr.bf16.mxu0 0
        %585 = vmatpush1.bf16.msra.mxu0 0
        %586 = vmatprep.subr.bf16.mxu0 0
        %587 = vmatpush1.bf16.msra.mxu0 0
        %588 = vmatprep.mubr.bf16.mxu0 0
        %589 = vmatmul.mubr.bf16.gmra.mrb[0].mxu0 %v554
        %v590 = vpop.f32.mrb[0].mxu0
        %v591 = vadd.f32 0.0, %v590
        %v592 = vpop.f32.mrb[0].mxu0
        %v593 = vpop.f32.mrb[0].mxu0
        %v594 = vpop.f32.mrb[0].mxu0
        %595 = vdwg.mxu0
        %v596 = vld [vmem:[%s6] sm:$0xf]
        %v597 = vld [vmem:[%s6 + $0x4] sm:$0xf]
        %v598 = vld [vmem:[%s6 + $0x8] sm:$0xf]
        %v599 = vld [vmem:[%s6 + $0xc] sm:$0xf]
        %v604 = vunpack.c.l.b16 %v596
        %v605 = vunpack.c.l.b16 %v597
        %v606 = vunpack.c.l.b16 %v598
        %v607 = vunpack.c.l.b16 %v599
        %v608 = vpack.c.b16 %v605, %v604
        %v609 = vpack.c.b16 %v607, %v606
        %v613 = vsel %vm552, %v533, 0
        %615 = vmatprep.subr.bf16.mxu0 0
        %616 = vmatpush1.bf16.msra.mxu0 %v608
        %617 = vmatprep.subr.bf16.mxu0 0
        %618 = vmatpush1.bf16.msra.mxu0 %v609
        %619 = vmatprep.subr.bf16.mxu0 0
        %620 = vmatpush1.bf16.msra.mxu0 0
        %621 = vmatprep.subr.bf16.mxu0 0
        %622 = vmatpush1.bf16.msra.mxu0 0
        %623 = vmatprep.subr.bf16.mxu0 0
        %624 = vmatpush1.bf16.msra.mxu0 0
        %625 = vmatprep.subr.bf16.mxu0 0
        %626 = vmatpush1.bf16.msra.mxu0 0
        %627 = vmatprep.subr.bf16.mxu0 0
        %628 = vmatpush1.bf16.msra.mxu0 0
        %629 = vmatprep.subr.bf16.mxu0 0
        %630 = vmatpush1.bf16.msra.mxu0 0
        %631 = vmatprep.subr.bf16.mxu0 0
        %632 = vmatpush1.bf16.msra.mxu0 0
        %633 = vmatprep.subr.bf16.mxu0 0
        %634 = vmatpush1.bf16.msra.mxu0 0
        %635 = vmatprep.subr.bf16.mxu0 0
        %636 = vmatpush1.bf16.msra.mxu0 0
        %637 = vmatprep.subr.bf16.mxu0 0
        %638 = vmatpush1.bf16.msra.mxu0 0
        %639 = vmatprep.subr.bf16.mxu0 0
        %640 = vmatpush1.bf16.msra.mxu0 0
        %641 = vmatprep.subr.bf16.mxu0 0
        %642 = vmatpush1.bf16.msra.mxu0 0
        %643 = vmatprep.subr.bf16.mxu0 0
        %644 = vmatpush1.bf16.msra.mxu0 0
        %645 = vmatprep.subr.bf16.mxu0 0
        %646 = vmatpush1.bf16.msra.mxu0 0
        %647 = vmatprep.mubr.bf16.mxu0 0
        %648 = vmatmul.mubr.bf16.gmra.mrb[0].mxu0 %v613
        %v649 = vpop.f32.mrb[0].mxu0
        %v650 = vadd.f32 0.0, %v649
        %v651 = vpop.f32.mrb[0].mxu0
        %v652 = vpop.f32.mrb[0].mxu0
        %v653 = vadd.f32 0.0, %v652
        %v654 = vpop.f32.mrb[0].mxu0
        %655 = vdwg.mxu0
        %v656 = vld [vmem:[%s7] sm:$0xf]
        %v657 = vld [vmem:[%s7 + $0x4] sm:$0xf]
        %v658 = vld [vmem:[%s7 + $0x8] sm:$0xf]
        %v659 = vld [vmem:[%s7 + $0xc] sm:$0xf]
        %v664 = vunpack.c.l.b16 %v656
        %v665 = vunpack.c.l.b16 %v657
        %v666 = vunpack.c.l.b16 %v658
        %v667 = vunpack.c.l.b16 %v659
        %v668 = vpack.c.b16 %v665, %v664
        %v669 = vpack.c.b16 %v667, %v666
        %672 = vmatprep.subr.bf16.mxu0 0
        %673 = vmatpush1.bf16.msra.mxu0 %v668
        %674 = vmatprep.subr.bf16.mxu0 0
        %675 = vmatpush1.bf16.msra.mxu0 %v669
        %676 = vmatprep.subr.bf16.mxu0 0
        %677 = vmatpush1.bf16.msra.mxu0 0
        %678 = vmatprep.subr.bf16.mxu0 0
        %679 = vmatpush1.bf16.msra.mxu0 0
        %680 = vmatprep.subr.bf16.mxu0 0
        %681 = vmatpush1.bf16.msra.mxu0 0
        %682 = vmatprep.subr.bf16.mxu0 0
        %683 = vmatpush1.bf16.msra.mxu0 0
        %684 = vmatprep.subr.bf16.mxu0 0
        %685 = vmatpush1.bf16.msra.mxu0 0
        %686 = vmatprep.subr.bf16.mxu0 0
        %687 = vmatpush1.bf16.msra.mxu0 0
        %688 = vmatprep.subr.bf16.mxu0 0
        %689 = vmatpush1.bf16.msra.mxu0 0
        %690 = vmatprep.subr.bf16.mxu0 0
        %691 = vmatpush1.bf16.msra.mxu0 0
        %692 = vmatprep.subr.bf16.mxu0 0
        %693 = vmatpush1.bf16.msra.mxu0 0
        %694 = vmatprep.subr.bf16.mxu0 0
        %695 = vmatpush1.bf16.msra.mxu0 0
        %696 = vmatprep.subr.bf16.mxu0 0
        %697 = vmatpush1.bf16.msra.mxu0 0
        %698 = vmatprep.subr.bf16.mxu0 0
        %699 = vmatpush1.bf16.msra.mxu0 0
        %700 = vmatprep.subr.bf16.mxu0 0
        %701 = vmatpush1.bf16.msra.mxu0 0
        %702 = vmatprep.subr.bf16.mxu0 0
        %703 = vmatpush1.bf16.msra.mxu0 0
        %704 = vmatprep.mubr.bf16.mxu0 0
        %705 = vmatmul.mubr.bf16.gmra.mrb[0].mxu0 %v613
        %v706 = vpop.f32.mrb[0].mxu0
        %v707 = vadd.f32 0.0, %v706
        %v708 = vpop.f32.mrb[0].mxu0
        %v709 = vpop.f32.mrb[0].mxu0
        %v710 = vadd.f32 0.0, %v709
        %v711 = vpop.f32.mrb[0].mxu0
        %712 = vdwg.mxu0
        %v713 = vpack.c.bf16 %v591, %v591
        %v714 = vpack.c.bf16 %v653, %v650
        %v716 = vsel %vm552, %v713, 0
        %v719 = vsel %vm552, %v714, 0
        %721 = vmatprep.subr.bf16.mxu0 0
        %722 = vmatpush1.bf16.xpose.msra.mxu0 %v719
        %723 = vmatprep.subr.bf16.mxu0 0
        %724 = vmatpush1.bf16.xpose.msra.mxu0 0
        %725 = vmatprep.subr.bf16.mxu0 0
        %726 = vmatpush1.bf16.xpose.msra.mxu0 0
        %727 = vmatprep.subr.bf16.mxu0 0
        %728 = vmatpush1.bf16.xpose.msra.mxu0 0
        %729 = vmatprep.subr.bf16.mxu0 0
        %730 = vmatpush1.bf16.xpose.msra.mxu0 0
        %731 = vmatprep.subr.bf16.mxu0 0
        %732 = vmatpush1.bf16.xpose.msra.mxu0 0
        %733 = vmatprep.subr.bf16.mxu0 0
        %734 = vmatpush1.bf16.xpose.msra.mxu0 0
        %735 = vmatprep.subr.bf16.mxu0 0
        %736 = vmatpush1.bf16.xpose.msra.mxu0 0
        %737 = vmatprep.subr.bf16.mxu0 0
        %738 = vmatpush1.bf16.xpose.msra.mxu0 0
        %739 = vmatprep.subr.bf16.mxu0 0
        %740 = vmatpush1.bf16.xpose.msra.mxu0 0
        %741 = vmatprep.subr.bf16.mxu0 0
        %742 = vmatpush1.bf16.xpose.msra.mxu0 0
        %743 = vmatprep.subr.bf16.mxu0 0
        %744 = vmatpush1.bf16.xpose.msra.mxu0 0
        %745 = vmatprep.subr.bf16.mxu0 0
        %746 = vmatpush1.bf16.xpose.msra.mxu0 0
        %747 = vmatprep.subr.bf16.mxu0 0
        %748 = vmatpush1.bf16.xpose.msra.mxu0 0
        %749 = vmatprep.subr.bf16.mxu0 0
        %750 = vmatpush1.bf16.xpose.msra.mxu0 0
        %751 = vmatprep.subr.bf16.mxu0 0
        %752 = vmatpush1.bf16.xpose.msra.mxu0 0
        %753 = vmatprep.mubr.bf16.mxu0 0
        %754 = vmatmul.mubr.bf16.gmra.mrb[0].mxu0 %v716
        %v755 = vpop.f32.mrb[0].mxu0
        %v756 = vadd.f32 0.0, %v755
        %v757 = vpop.f32.mrb[0].mxu0
        %v758 = vpop.f32.mrb[0].mxu0
        %v759 = vpop.f32.mrb[0].mxu0
        %760 = vdwg.mxu0
        %v761 = vmul.f32 %v756, 0.17677669
        %v762 = vld [vmem:[%s509] sm:$0xff]
        %v763 = vadd.f32 %v761, %v762
        %vm764 = vcmask 130048
        %v765 = vsel %vm764, %v763, -inf
        %766 = vmax.xlane.f32.xlu0 %v765
        %v767 = vpop.xlane.xlu0 %766
        %v768 = vsub.f32 %v763, %v767
        %v769 = vmul.f32 %v768, 1.442695
        %v770 = vpow.pop %v769
        %v771 = vsel %vm764, %v770, 0.0
        %772 = vadd.xlane.f32.xlu0 %v771
        %v773 = vpop.xlane.xlu0 %772
        %v774 = vrcp.pop %v773
        %v775 = vmul.f32 %v770, %v774
        %v776 = vpack.c.bf16 %v775, %v775
        %v777 = vpack.c.bf16 %v710, %v707
        %v779 = vsel %vm764, %v776, 0
        %781 = vmatprep.subr.bf16.mxu0 0
        %782 = vmatpush1.bf16.msra.mxu0 %v777
        %783 = vmatprep.subr.bf16.mxu0 0
        %784 = vmatpush1.bf16.msra.mxu0 0
        %785 = vmatprep.subr.bf16.mxu0 0
        %786 = vmatpush1.bf16.msra.mxu0 0
        %787 = vmatprep.subr.bf16.mxu0 0
        %788 = vmatpush1.bf16.msra.mxu0 0
        %789 = vmatprep.subr.bf16.mxu0 0
        %790 = vmatpush1.bf16.msra.mxu0 0
        %791 = vmatprep.subr.bf16.mxu0 0
        %792 = vmatpush1.bf16.msra.mxu0 0
        %793 = vmatprep.subr.bf16.mxu0 0
        %794 = vmatpush1.bf16.msra.mxu0 0
        %795 = vmatprep.subr.bf16.mxu0 0
        %796 = vmatpush1.bf16.msra.mxu0 0
        %797 = vmatprep.subr.bf16.mxu0 0
        %798 = vmatpush1.bf16.msra.mxu0 0
        %799 = vmatprep.subr.bf16.mxu0 0
        %800 = vmatpush1.bf16.msra.mxu0 0
        %801 = vmatprep.subr.bf16.mxu0 0
        %802 = vmatpush1.bf16.msra.mxu0 0
        %803 = vmatprep.subr.bf16.mxu0 0
        %804 = vmatpush1.bf16.msra.mxu0 0
        %805 = vmatprep.subr.bf16.mxu0 0
        %806 = vmatpush1.bf16.msra.mxu0 0
        %807 = vmatprep.subr.bf16.mxu0 0
        %808 = vmatpush1.bf16.msra.mxu0 0
        %809 = vmatprep.subr.bf16.mxu0 0
        %810 = vmatpush1.bf16.msra.mxu0 0
        %811 = vmatprep.subr.bf16.mxu0 0
        %812 = vmatpush1.bf16.msra.mxu0 0
        %813 = vmatprep.mubr.bf16.mxu0 0
        %814 = vmatmul.mubr.bf16.gmra.mrb[0].mxu0 %v779
        %v815 = vpop.f32.mrb[0].mxu0
        %v816 = vadd.f32 0.0, %v815
        %v817 = vpop.f32.mrb[0].mxu0
        %v818 = vpop.f32.mrb[0].mxu0
        %v819 = vpop.f32.mrb[0].mxu0
        %820 = vdwg.mxu0
        %v821 = vpack.c.bf16 %v816, %v816
        %v822 = vld [vmem:[%s8] sm:$0xf]
        %v823 = vld [vmem:[%s8 + $0x4] sm:$0xf]
        %v824 = vld [vmem:[%s8 + $0x8] sm:$0xf]
        %v825 = vld [vmem:[%s8 + $0xc] sm:$0xf]
        %v830 = vunpack.c.l.b16 %v822
        %v831 = vunpack.c.l.b16 %v823
        %v832 = vunpack.c.l.b16 %v824
        %v833 = vunpack.c.l.b16 %v825
        %v834 = vpack.c.b16 %v831, %v830
        %v835 = vpack.c.b16 %v833, %v832
        %v839 = vsel %vm552, %v821, 0
        %841 = vmatprep.subr.bf16.mxu0 0
        %842 = vmatpush1.bf16.msra.mxu0 %v834
        %843 = vmatprep.subr.bf16.mxu0 0
        %844 = vmatpush1.bf16.msra.mxu0 %v835
        %845 = vmatprep.subr.bf16.mxu0 0
        %846 = vmatpush1.bf16.msra.mxu0 0
        %847 = vmatprep.subr.bf16.mxu0 0
        %848 = vmatpush1.bf16.msra.mxu0 0
        %849 = vmatprep.subr.bf16.mxu0 0
        %850 = vmatpush1.bf16.msra.mxu0 0
        %851 = vmatprep.subr.bf16.mxu0 0
        %852 = vmatpush1.bf16.msra.mxu0 0
        %853 = vmatprep.subr.bf16.mxu0 0
        %854 = vmatpush1.bf16.msra.mxu0 0
        %855 = vmatprep.subr.bf16.mxu0 0
        %856 = vmatpush1.bf16.msra.mxu0 0
        %857 = vmatprep.subr.bf16.mxu0 0
        %858 = vmatpush1.bf16.msra.mxu0 0
        %859 = vmatprep.subr.bf16.mxu0 0
        %860 = vmatpush1.bf16.msra.mxu0 0
        %861 = vmatprep.subr.bf16.mxu0 0
        %862 = vmatpush1.bf16.msra.mxu0 0
        %863 = vmatprep.subr.bf16.mxu0 0
        %864 = vmatpush1.bf16.msra.mxu0 0
        %865 = vmatprep.subr.bf16.mxu0 0
        %866 = vmatpush1.bf16.msra.mxu0 0
        %867 = vmatprep.subr.bf16.mxu0 0
        %868 = vmatpush1.bf16.msra.mxu0 0
        %869 = vmatprep.subr.bf16.mxu0 0
        %870 = vmatpush1.bf16.msra.mxu0 0
        %871 = vmatprep.subr.bf16.mxu0 0
        %872 = vmatpush1.bf16.msra.mxu0 0
        %873 = vmatprep.mubr.bf16.mxu0 0
        %874 = vmatmul.mubr.bf16.gmra.mrb[0].mxu0 %v839
        %v875 = vpop.f32.mrb[0].mxu0
        %v876 = vadd.f32 0.0, %v875
        %v877 = vpop.f32.mrb[0].mxu0
        %v878 = vpop.f32.mrb[0].mxu0
        %v879 = vpop.f32.mrb[0].mxu0
        %880 = vdwg.mxu0
        %v881 = vadd.f32 %v532, %v876
        %v882 = vpack.c.bf16 %v881, %v881
        %v883 = vld [vmem:[%s9] sm:$0xf]
        %v884 = vld [vmem:[%s9 + $0x4] sm:$0xf]
        %v885 = vld [vmem:[%s9 + $0x8] sm:$0xf]
        %v886 = vld [vmem:[%s9 + $0xc] sm:$0xf]
        %v891 = vunpack.c.l.b16 %v883
        %v892 = vunpack.c.l.b16 %v884
        %v893 = vunpack.c.l.b16 %v885
        %v894 = vunpack.c.l.b16 %v886
        %v895 = vpack.c.b16 %v892, %v891
        %v896 = vpack.c.b16 %v894, %v893
        %v900 = vsel %vm552, %v882, 0
        %902 = vmatprep.subr.bf16.mxu0 0
        %903 = vmatpush1.bf16.msra.mxu0 %v895
        %904 = vmatprep.subr.bf16.mxu0 0
        %905 = vmatpush1.bf16.msra.mxu0 %v896
        %906 = vmatprep.subr.bf16.mxu0 0
        %907 = vmatpush1.bf16.msra.mxu0 0
        %908 = vmatprep.subr.bf16.mxu0 0
        %909 = vmatpush1.bf16.msra.mxu0 0
        %910 = vmatprep.subr.bf16.mxu0 0
        %911 = vmatpush1.bf16.msra.mxu0 0
        %912 = vmatprep.subr.bf16.mxu0 0
        %913 = vmatpush1.bf16.msra.mxu0 0
        %914 = vmatprep.subr.bf16.mxu0 0
        %915 = vmatpush1.bf16.msra.mxu0 0
        %916 = vmatprep.subr.bf16.mxu0 0
        %917 = vmatpush1.bf16.msra.mxu0 0
        %918 = vmatprep.subr.bf16.mxu0 0
        %919 = vmatpush1.bf16.msra.mxu0 0
        %920 = vmatprep.subr.bf16.mxu0 0
        %921 = vmatpush1.bf16.msra.mxu0 0
        %922 = vmatprep.subr.bf16.mxu0 0
        %923 = vmatpush1.bf16.msra.mxu0 0
        %924 = vmatprep.subr.bf16.mxu0 0
        %925 = vmatpush1.bf16.msra.mxu0 0
        %926 = vmatprep.subr.bf16.mxu0 0
        %927 = vmatpush1.bf16.msra.mxu0 0
        %928 = vmatprep.subr.bf16.mxu0 0
        %929 = vmatpush1.bf16.msra.mxu0 0
        %930 = vmatprep.subr.bf16.mxu0 0
        %931 = vmatpush1.bf16.msra.mxu0 0
        %932 = vmatprep.subr.bf16.mxu0 0
        %933 = vmatpush1.bf16.msra.mxu0 0
        %934 = vmatprep.mubr.bf16.mxu0 0
        %935 = vmatmul.mubr.bf16.gmra.mrb[0].mxu0 %v900
        %v936 = vpop.f32.mrb[0].mxu0
        %v937 = vadd.f32 0.0, %v936
        %v938 = vpop.f32.mrb[0].mxu0
        %v939 = vpop.f32.mrb[0].mxu0
        %v940 = vpop.f32.mrb[0].mxu0
        %941 = vdwg.mxu0
        %v942 = vmul.f32 %v937, %v937
        %v943 = vmul.f32 %v937, %v942
        %v944 = vmul.f32 %v943, 0.044715
        %v945 = vadd.f32 %v937, %v944
        %v946 = vmul.f32 %v945, 0.7978846
        %v947 = vtanh.pop %v946
        %v948 = vadd.f32 %v947, 1.0
        %v949 = vmul.f32 %v948, 0.5
        %v950 = vmul.f32 %v937, %v949
        %v951 = vld [vmem:[%s11] sm:$0xf]
        %v952 = vld [vmem:[%s11 + $0x4] sm:$0xf]
        %v953 = vld [vmem:[%s11 + $0x8] sm:$0xf]
        %v954 = vld [vmem:[%s11 + $0xc] sm:$0xf]
        %v955 = vpack.c.bf16 %v950, %v950
        %v956 = vld [vmem:[%s10] sm:$0xf]
        %v957 = vld [vmem:[%s10 + $0x4] sm:$0xf]
        %v958 = vld [vmem:[%s10 + $0x8] sm:$0xf]
        %v959 = vld [vmem:[%s10 + $0xc] sm:$0xf]
        %v960 = vld [vmem:[%s10 + $0x10] sm:$0xf]
        %v961 = vld [vmem:[%s10 + $0x14] sm:$0xf]
        %v962 = vld [vmem:[%s10 + $0x18] sm:$0xf]
        %v963 = vld [vmem:[%s10 + $0x1c] sm:$0xf]
        %v964 = vld [vmem:[%s10 + $0x20] sm:$0xf]
        %v965 = vld [vmem:[%s10 + $0x24] sm:$0xf]
        %v966 = vld [vmem:[%s10 + $0x28] sm:$0xf]
        %v967 = vld [vmem:[%s10 + $0x2c] sm:$0xf]
        %v968 = vld [vmem:[%s10 + $0x30] sm:$0xf]
        %v969 = vld [vmem:[%s10 + $0x34] sm:$0xf]
        %v970 = vld [vmem:[%s10 + $0x38] sm:$0xf]
        %v971 = vld [vmem:[%s10 + $0x3c] sm:$0xf]
        %v988 = vunpack.c.l.b16 %v956
        %v989 = vunpack.c.l.b16 %v957
        %v990 = vunpack.c.l.b16 %v958
        %v991 = vunpack.c.l.b16 %v959
        %v992 = vunpack.c.l.b16 %v960
        %v993 = vunpack.c.l.b16 %v961
        %v994 = vunpack.c.l.b16 %v962
        %v995 = vunpack.c.l.b16 %v963
        %v996 = vunpack.c.l.b16 %v964
        %v997 = vunpack.c.l.b16 %v965
        %v998 = vunpack.c.l.b16 %v966
        %v999 = vunpack.c.l.b16 %v967
        %v1000 = vunpack.c.l.b16 %v968
        %v1001 = vunpack.c.l.b16 %v969
        %v1002 = vunpack.c.l.b16 %v970
        %v1003 = vunpack.c.l.b16 %v971
        %v1004 = vpack.c.b16 %v989, %v988
        %v1005 = vpack.c.b16 %v991, %v990
        %v1006 = vpack.c.b16 %v993, %v992
        %v1007 = vpack.c.b16 %v995, %v994
        %v1008 = vpack.c.b16 %v997, %v996
        %v1009 = vpack.c.b16 %v999, %v998
        %v1010 = vpack.c.b16 %v1001, %v1000
        %v1011 = vpack.c.b16 %v1003, %v1002
        %1020 = vmatprep.subr.bf16.mxu0 0
        %1021 = vmatpush1.bf16.msra.mxu0 %v1004
        %1022 = vmatprep.subr.bf16.mxu0 0
        %1023 = vmatpush1.bf16.msra.mxu0 %v1005
        %1024 = vmatprep.subr.bf16.mxu0 0
        %1025 = vmatpush1.bf16.msra.mxu0 %v1006
        %1026 = vmatprep.subr.bf16.mxu0 0
        %1027 = vmatpush1.bf16.msra.mxu0 %v1007
        %1028 = vmatprep.subr.bf16.mxu0 0
        %1029 = vmatpush1.bf16.msra.mxu0 %v1008
        %1030 = vmatprep.subr.bf16.mxu0 0
        %1031 = vmatpush1.bf16.msra.mxu0 %v1009
        %1032 = vmatprep.subr.bf16.mxu0 0
        %1033 = vmatpush1.bf16.msra.mxu0 %v1010
        %1034 = vmatprep.subr.bf16.mxu0 0
        %1035 = vmatpush1.bf16.msra.mxu0 %v1011
        %1036 = vmatprep.subr.bf16.mxu0 0
        %1037 = vmatpush1.bf16.msra.mxu0 0
        %1038 = vmatprep.subr.bf16.mxu0 0
        %1039 = vmatpush1.bf16.msra.mxu0 0
        %1040 = vmatprep.subr.bf16.mxu0 0
        %1041 = vmatpush1.bf16.msra.mxu0 0
        %1042 = vmatprep.subr.bf16.mxu0 0
        %1043 = vmatpush1.bf16.msra.mxu0 0
        %1044 = vmatprep.subr.bf16.mxu0 0
        %1045 = vmatpush1.bf16.msra.mxu0 0
        %1046 = vmatprep.subr.bf16.mxu0 0
        %1047 = vmatpush1.bf16.msra.mxu0 0
        %1048 = vmatprep.subr.bf16.mxu0 0
        %1049 = vmatpush1.bf16.msra.mxu0 0
        %1050 = vmatprep.subr.bf16.mxu0 0
        %1051 = vmatpush1.bf16.msra.mxu0 0
        %1052 = vmatprep.mubr.bf16.mxu0 0
        %1053 = vmatmul.mubr.bf16.gmra.mrb[0].mxu0 %v955
        %v1054 = vpop.f32.mrb[0].mxu0
        %v1055 = vadd.f32 0.0, %v1054
        %v1056 = vpop.f32.mrb[0].mxu0
        %v1057 = vpop.f32.mrb[0].mxu0
        %v1058 = vpop.f32.mrb[0].mxu0
        %1059 = vdwg.mxu0
        %v1064 = vunpack.c.l.b16 %v951
        %v1065 = vunpack.c.l.b16 %v952
        %v1066 = vunpack.c.l.b16 %v953
        %v1067 = vunpack.c.l.b16 %v954
        %v1068 = vpack.c.b16 %v1065, %v1064
        %v1069 = vpack.c.b16 %v1067, %v1066
        %1072 = vmatprep.subr.bf16.mxu0 0
        %1073 = vmatpush1.bf16.msra.mxu0 %v1068
        %1074 = vmatprep.subr.bf16.mxu0 0
        %1075 = vmatpush1.bf16.msra.mxu0 %v1069
        %1076 = vmatprep.subr.bf16.mxu0 0
        %1077 = vmatpush1.bf16.msra.mxu0 0
        %1078 = vmatprep.subr.bf16.mxu0 0
        %1079 = vmatpush1.bf16.msra.mxu0 0
        %1080 = vmatprep.subr.bf16.mxu0 0
        %1081 = vmatpush1.bf16.msra.mxu0 0
        %1082 = vmatprep.subr.bf16.mxu0 0
        %1083 = vmatpush1.bf16.msra.mxu0 0
        %1084 = vmatprep.subr.bf16.mxu0 0
        %1085 = vmatpush1.bf16.msra.mxu0 0
        %1086 = vmatprep.subr.bf16.mxu0 0
        %1087 = vmatpush1.bf16.msra.mxu0 0
        %1088 = vmatprep.subr.bf16.mxu0 0
        %1089 = vmatpush1.bf16.msra.mxu0 0
        %1090 = vmatprep.subr.bf16.mxu0 0
        %1091 = vmatpush1.bf16.msra.mxu0 0
        %1092 = vmatprep.subr.bf16.mxu0 0
        %1093 = vmatpush1.bf16.msra.mxu0 0
        %1094 = vmatprep.subr.bf16.mxu0 0
        %1095 = vmatpush1.bf16.msra.mxu0 0
        %1096 = vmatprep.subr.bf16.mxu0 0
        %1097 = vmatpush1.bf16.msra.mxu0 0
        %1098 = vmatprep.subr.bf16.mxu0 0
        %1099 = vmatpush1.bf16.msra.mxu0 0
        %1100 = vmatprep.subr.bf16.mxu0 0
        %1101 = vmatpush1.bf16.msra.mxu0 0
        %1102 = vmatprep.subr.bf16.mxu0 0
        %1103 = vmatpush1.bf16.msra.mxu0 0
        %1104 = vmatprep.mubr.bf16.mxu0 0
        %1105 = vmatmul.mubr.bf16.gmra.mrb[0].mxu0 %v900
        %v1106 = vpop.f32.mrb[0].mxu0
        %v1107 = vadd.f32 %v1055, %v1106
        %v1108 = vpop.f32.mrb[0].mxu0
        %v1109 = vpop.f32.mrb[0].mxu0
        %v1110 = vpop.f32.mrb[0].mxu0
        %1111 = vdwg.mxu0
        %1112 = vst [vmem:[%s493] sm:$0xff] %v1107
        %1113 = vmax.xlane.f32.xlu0 %v1107
        %v1114 = vpop.xlane.xlu0 %1113
        %v1115 = vsub.f32 %v1107, %v1114
        %v1116 = vmul.f32 %v1115, 1.442695
        %v1117 = vpow.pop %v1116
        %1118 = vadd.xlane.f32.xlu0 %v1117
        %v1119 = vpop.xlane.xlu0 %1118
        %v1120 = vlog2.pop %v1119
        %v1121 = vmul.f32 %v1120, 0.6931472
        %v1122 = vadd.f32 %v1121, %v1114
        %v1123 = vld [vmem:[%s513] sm:$0xff]
        %v1124 = vlaneseq
        %v1125 = vand.u32 %v1124, 127
        %1126 = vset.pattern.permute.xlu0 0
        %1127 = vperm.xlu0 %1126, %v1123
        %v1128 = vpop.permute.xlu0 %1127
        %vm1129 = vcmp.eq.s32.totalorder %v1125, %v1128
        %v1130 = vsel %vm1129, %v1107, 0.0
        %1131 = vadd.xlane.f32.xlu0 %v1130
        %v1132 = vpop.xlane.xlu0 %1131
        %vm1133 = vcmp.ge.s32.totalorder %v1123, 0
        %v1134 = vsel %vm1133, 1, 0
        %v1135 = vcvt.s32.f32 %v1134
        %v1136 = vsub.f32 %v1122, %v1132
        %v1137 = vmul.f32 %v1136, %v1135
        %vm1138 = vcmask 7168
        %v1139 = vsel %vm1138, %v1137, 0.0
        %1140 = vadd.xlane.f32.xlu0 %v1139
        %v1141 = vpop.xlane.xlu0 %1140
        %v1142 = vrot.slane %v1141, 4
        %v1143 = vadd.f32 %v1141, %v1142
        %v1144 = vrot.slane %v1143, 2
        %v1145 = vadd.f32 %v1143, %v1144
        %v1146 = vrot.slane %v1145, 1
        %v1147 = vadd.f32 %v1145, %v1146
        %s1148 = vtos %v1147
        %v1149 = vld [vmem:[%s518] sm:$0xff]
        %v1150 = vld [vmem:[%s518 + $0x8] sm:$0xff]
        %v1151 = vld [vmem:[%s524] sm:$0xff]
        %v1152 = vld [vmem:[%s524 + $0x8] sm:$0xff]
        %v1153 = vsub.f32 %v1149, %v1151
        %v1154 = vsub.f32 %v1150, %v1152
        %v1155 = vmul.f32 %v1153, %v1153
        %v1156 = vmul.f32 %v1154, %v1154
        %v1157 = vsel %vm552, %v1155, 0.0
        %v1158 = vsel %vm552, %v1156, 0.0
        %v1159 = vadd.f32 %v1157, %v1158
        %1160 = vadd.xlane.f32.xlu0 %v1159
        %v1161 = vpop.xlane.xlu0 %1160
        %v1162 = vrot.slane %v1161, 4
        %v1163 = vadd.f32 %v1161, %v1162
        %v1164 = vrot.slane %v1163, 2
        %v1165 = vadd.f32 %v1163, %v1164
        %v1166 = vrot.slane %v1165, 1
        %v1167 = vadd.f32 %v1165, %v1166
        %s1168 = vtos %v1167
        %v1169 = vlaneseq
        %v1170 = vshrl.u32 %v1169, 7
        %vm1171 = vcmp.eq.s32.totalorder %v1170, 0
        %vm1172 = vcmp.eq.s32.totalorder %v1125, 0
        %vm1173 = vmand %vm1171, %vm1172
        %vm1174 = vcmp.eq.s32.totalorder %v1125, 1
        %vm1175 = vmand %vm1171, %vm1174
        %v1176 = vstv %s1168
        %v1177 = vsel %vm1175, %v1176, 0.0
        %v1178 = vstv %s1148
        %v1179 = vsel %vm1173, %v1178, %v1177
        %1180 = vst [vmem:[%s529] sm:$0xff] %v1179
        %s1181 = sand.u32 %s313, 1
        %s1182 = scalar_lea.sflag [#allocation3], %s1181
        %s1183 = sand.u32 %s313, 1
        %s1184 = smul.addr %s1183, 8
        %s1185 = scalar_lea.vmem [#allocation2], %s1184
        %p1186 = scmp.lt.s32.totalorder %s28, 1
        %s1187 = scalar_select %p1186, %s28, 1
        %s1188 = smul.addr %s1187, 8
        %s1189 = scalar_lea.vmem %s13, %s1188
        // Predicated region
        $region69: #{run.1} parent=67 // pred_check
          %p1190 = pneg %p323
        $region70: #{run.1} parent=67 // pred_check_branch
          %1192 = sbr.rel (%p1190) target = $region72
        $region71: #{run.1} parent=67 // pred_region
          %s1194 = ssub.s32 128, 128
          %1195 = vsyncadd %s1182, %s1194
          %s1196 = smul.addr %s28, 128
          %s1197 = scalar_lea.hbm %s12, %s1196
          %s1199 = sshll.u32 %s1185, 4
          %s1200 = int_to_ptr.vmem [resolvable:$true] %s1199
          %1202 = dma.vmem_to_hbm [thread:$0]  %s1200, 128, %s1197, %s1182
        $region72: #{run.1} parent=67 // pred_fallthru
          _
        // Predicated region
        $region73: #{run.1} parent=67 // pred_check
          %p1203 = pneg %p349
        $region74: #{run.1} parent=67 // pred_check_branch
          %1205 = sbr.rel (%p1203) target = $region76
        $region75: #{run.1} parent=67 // pred_region
          _
        $region76: #{run.1} parent=67 // pred_fallthru
          _
      $region68: #{run.1} parent=5 // pred_fallthru
        _
      %p1206 = scmp.le.s32.totalorder 2, %s23
      // Predicated region
      $region77: #{run.1} parent=5 // pred_check
        %p1207 = pneg %p1206
      $region78: #{run.1} parent=5 // pred_check_branch
        %1209 = sbr.rel (%p1207) target = $region80
      $region79: #{run.1} parent=5 // pred_region
        %s1210 = ssub.s32 %s23, 2
        // Predicated region
        $region81: #{run.1} parent=79 // pred_check
          %p1211 = pneg %p329
        $region82: #{run.1} parent=79 // pred_check_branch
          %1213 = sbr.rel (%p1211) target = $region84
        $region83: #{run.1} parent=79 // pred_region
          %s1214 = sand.u32 %s314, 1
          %s1215 = scalar_lea.sflag [#allocation3], %s1214
          %s1216 = sand.u32 %s314, 1
          %s1217 = smul.addr %s1216, 8
          %s1218 = scalar_lea.vmem [#allocation2], %s1217
          %1219 = dma.done %s1215, 128
        $region84: #{run.1} parent=79 // pred_fallthru
          _
        // Predicated region
        $region85: #{run.1} parent=79 // pred_check
          %p1220 = pneg %p355
        $region86: #{run.1} parent=79 // pred_check_branch
          %1222 = sbr.rel (%p1220) target = $region88
        $region87: #{run.1} parent=79 // pred_region
          %p1223 = scmp.lt.s32.totalorder %s29, 1
          %s1224 = scalar_select %p1223, %s29, 1
          %s1225 = smul.addr %s1224, 8
          %s1226 = scalar_lea.vmem %s13, %s1225
        $region88: #{run.1} parent=79 // pred_fallthru
          _
      $region80: #{run.1} parent=5 // pred_fallthru
        _
    $region6: #{run.1} parent=1 // loop_footer
      %s27 = sadd.s32 1, %s23
    $region7: #{run.1} parent=1 // loop_footer_branch
      %22 = sbr.rel target = $region3
    $region8: #{run.1} parent=1 // loop_exit
      _
    %1227 = vsyncpa [#allocation3], 1
    %s1228 = scalar_lea.sflag [#allocation3], 1
    %1229 = vsyncpa %s1228, 1

</llo_original>
